<compile_context>
chip_gen: v7x
topology: tpu7x:2x2x1
jax: 0.10.0
libtpu: 0.0.40
codegen_flags: <defaults>
</compile_context>

<pallas_src>
import math

import jax
import jax.numpy as jnp
import numpy as np
from jax import lax
from jax.experimental import pallas as pl
from jax.experimental.pallas import tpu as pltpu

DEC_DIM = 32     # dec_dim
ENC_DIM = 64     # enc_dim
DIM_FF = 64      # dim_feedforward
NHEAD_SA = 8     # fixed: nn.MultiheadAttention(dec_dim, 8)
NHEAD_CA = 4     # `nhead` constructor arg (cross-attention heads)
LN_EPS = 1e-5

PARAM_NAMES = (
    "sa_wq", "sa_bq", "sa_wk", "sa_bk", "sa_wv", "sa_bv", "sa_wo", "sa_bo",
    "ca_wq", "ca_bq", "ca_wk", "ca_bk", "ca_wv", "ca_bv", "ca_wo", "ca_bo",
    "l1_w", "l1_b", "l2_w", "l2_b",
    "n1_g", "n1_b", "n2_g", "n2_b", "n3_g", "n3_b",
)

# --- packed-slab layout ------------------------------------------------------
# Weight slab (bf16): (NUM_W, 64, 128), each matrix at [idx, :rows, :cols]
IW_SA_QKV, IW_SA_O, IW_CA_Q, IW_CA_KV, IW_CA_O, IW_L1, IW_L2 = range(7)
NUM_W = 7
# Bias / LayerNorm slab (f32): (NUM_B, 128), each vector at [idx, :cols]
(IB_SA_QKV, IB_SA_O, IB_CA_Q, IB_CA_KV, IB_CA_O, IB_L1, IB_L2,
 IB_N1G, IB_N1B, IB_N2G, IB_N2B, IB_N3G, IB_N3B) = range(13)
NUM_B = 13


# ---------------------------------------------------------------------------
# in-kernel helpers
# ---------------------------------------------------------------------------
def _layernorm(x, gamma, beta):
    mu = jnp.mean(x, axis=-1, keepdims=True)
    xc = x - mu
    var = jnp.mean(xc * xc, axis=-1, keepdims=True)
    return xc * lax.rsqrt(var + LN_EPS) * gamma + beta


def _bd_mha(q, k, v, mask, nheads):
    """Multi-head attention with ALL heads folded into single MXU matmuls.

    q: (Bb, Lq, D) f32, already scaled by 1/sqrt(head_dim) via weight folding.
    k, v: (Bb, Lk, D) f32.
    mask: (G, D) f32 precomputed host-side, mask[g, d] = [g//Lk == d//(D//nh)].
          It serves both as the block-diagonal selector for K/V and as the
          per-head "ones" block that broadcasts the softmax denominator.
    """
    Bb, Lq, D = q.shape
    Lk = k.shape[1]
    G = nheads * Lk
    bf16 = jnp.bfloat16

    # Block-diagonal K / V: sublane tiling * shared constant mask (no iota,
    # no XLU transpose, no lane-axis concatenates).
    k_bd = (jnp.concatenate([k] * nheads, axis=1) * mask[None]).astype(bf16)
    v_bd = (jnp.concatenate([v] * nheads, axis=1) * mask[None]).astype(bf16)

    # Per-head scores of every head in one lane-dense matmul: (Bb, Lq, G).
    s = lax.dot_general(q.astype(bf16), k_bd,
                        (((2,), (2,)), ((0,), (0,))),
                        preferred_element_type=jnp.float32)
    m = jnp.max(s, axis=-1, keepdims=True)        # global row max (>= per head)
    e = jnp.exp(s - m)                            # f32 EUP

    # Un-normalised context, then normalise AFTER the PV matmul: each output
    # column only receives contributions from its own head, so dividing by the
    # per-head denominator (broadcast to D columns by e @ mask) is exact.
    ctx = lax.dot_general(e.astype(bf16), v_bd,
                          (((2,), (1,)), ((0,), (0,))),
                          preferred_element_type=jnp.float32)
    denom = jnp.dot(e.reshape(Bb * Lq, G), mask,
                    preferred_element_type=jnp.float32).reshape(Bb, Lq, D)
    # Clamp: if one head's best score sits ~88 below the global row max its
    # exps all underflow; the clamp keeps the approx reciprocal finite (that
    # head's output degrades to ~0 instead of NaN).
    return ctx * pl.reciprocal(jnp.maximum(denom, 1e-20), approx=True)


# ---------------------------------------------------------------------------
# Pallas kernel: one grid step processes bb batch elements entirely in VMEM
# ---------------------------------------------------------------------------
def _layer_kernel(tgt_ref, pos_ref, mem_ref, w_ref, b_ref, mask_ref, out_ref):
    Bb, L, D = tgt_ref.shape
    S, E = mem_ref.shape[1], mem_ref.shape[2]
    F = DIM_FF
    bf16 = jnp.bfloat16

    def _w(i, rows, cols):
        return w_ref[i, :rows, :cols]            # bf16 weights

    def _b(i, cols):
        return b_ref[i:i + 1, :cols]             # f32 bias / LN row

    mask_sa = mask_ref[:NHEAD_SA * L, :]         # (8*L, D) f32, constant
    mask_ca = mask_ref[NHEAD_SA * L:, :]         # (4*S, D) f32, constant

    x = tgt_ref[...].reshape(Bb * L, D)          # f32 residual stream
    pos = pos_ref[...].reshape(Bb * L, D)
    mem = mem_ref[...].reshape(Bb * S, E)

    # ------- self attention: fused [x|pos] -> (q|k|v) in ONE matmul ----------
    xp = jnp.concatenate([x, pos], axis=-1).astype(bf16)          # (M, 2D)
    qkv = jnp.dot(xp, _w(IW_SA_QKV, 2 * D, 3 * D),
                  preferred_element_type=jnp.float32) + _b(IB_SA_QKV, 3 * D)
    ctx = _bd_mha(qkv[:, :D].reshape(Bb, L, D),
                  qkv[:, D:2 * D].reshape(Bb, L, D),
                  qkv[:, 2 * D:].reshape(Bb, L, D), mask_sa, NHEAD_SA)
    sa = jnp.dot(ctx.reshape(Bb * L, D).astype(bf16), _w(IW_SA_O, D, D),
                 preferred_element_type=jnp.float32) + _b(IB_SA_O, D)
    x = _layernorm(x + sa, _b(IB_N1G, D), _b(IB_N1B, D))

    # ------- cross attention over flattened memory (see TODO above) ----------
    q_ca = jnp.dot((x + pos).astype(bf16), _w(IW_CA_Q, D, D),
                   preferred_element_type=jnp.float32) + _b(IB_CA_Q, D)
    kv = jnp.dot(mem.astype(bf16), _w(IW_CA_KV, E, 2 * D),
                 preferred_element_type=jnp.float32) + _b(IB_CA_KV, 2 * D)
    ctx = _bd_mha(q_ca.reshape(Bb, L, D),
                  kv[:, :D].reshape(Bb, S, D),
                  kv[:, D:].reshape(Bb, S, D), mask_ca, NHEAD_CA)
    ca = jnp.dot(ctx.reshape(Bb * L, D).astype(bf16), _w(IW_CA_O, D, D),
                 preferred_element_type=jnp.float32) + _b(IB_CA_O, D)
    x = _layernorm(x + ca, _b(IB_N2G, D), _b(IB_N2B, D))

    # ------- FFN --------------------------------------------------------------
    h = jnp.maximum(
        jnp.dot(x.astype(bf16), _w(IW_L1, D, F),
                preferred_element_type=jnp.float32) + _b(IB_L1, F), 0.0)
    f = jnp.dot(h.astype(bf16), _w(IW_L2, F, D),
                preferred_element_type=jnp.float32) + _b(IB_L2, D)
    x = _layernorm(x + f, _b(IB_N3G, D), _b(IB_N3B, D))

    out_ref[...] = x.reshape(Bb, L, D)


# ---------------------------------------------------------------------------
# host-side parameter / mask packing
# ---------------------------------------------------------------------------
def pack_params(params):
    """Pack the 26 layer params into two VMEM slabs (weights bf16, biases/LN
    f32); fold 1/sqrt(head_dim) into Wq/bq, fuse self-attn q/k/v into one
    [x|pos]-driven matmul, and column-fuse the cross-attn k/v projection.

    NOTE: weights follow the x @ W convention used by init_params below;
    PyTorch checkpoints (x @ W^T, packed in_proj_weight) would need transposing
    and splitting before packing.
    """
    D, E, F = DEC_DIM, ENC_DIM, DIM_FF
    s_sa = 1.0 / math.sqrt(D // NHEAD_SA)
    s_ca = 1.0 / math.sqrt(D // NHEAD_CA)
    g = lambda n: np.asarray(params[n], np.float32)

    w = np.zeros((NUM_W, 64, 128), np.float32)
    b = np.zeros((NUM_B, 128), np.float32)

    def put_w(i, mat):
        w[i, :mat.shape[0], :mat.shape[1]] = mat

    def put_b(i, vec):
        v = np.asarray(vec, np.float32).reshape(-1)
        b[i, :v.shape[0]] = v

    # self-attn fused qkv:  [x | pos] @ W -> [q | k | v], scale folded into Wq
    w_x = np.concatenate([g("sa_wq") * s_sa, g("sa_wk"), g("sa_wv")], axis=1)
    w_p = np.concatenate([g("sa_wq") * s_sa, g("sa_wk"),
                          np.zeros((D, D), np.float32)], axis=1)
    put_w(IW_SA_QKV, np.concatenate([w_x, w_p], axis=0))           # (2D, 3D)
    put_b(IB_SA_QKV, np.concatenate([g("sa_bq").reshape(-1) * s_sa,
                                     g("sa_bk").reshape(-1),
                                     g("sa_bv").reshape(-1)]))
    put_w(IW_SA_O, g("sa_wo")); put_b(IB_SA_O, g("sa_bo"))
    # cross-attn query (scale folded); k/v column-fused from memory
    put_w(IW_CA_Q, g("ca_wq") * s_ca)
    put_b(IB_CA_Q, g("ca_bq").reshape(-1) * s_ca)
    put_w(IW_CA_KV, np.concatenate([g("ca_wk"), g("ca_wv")], axis=1))
    put_b(IB_CA_KV, np.concatenate([g("ca_bk").reshape(-1),
                                    g("ca_bv").reshape(-1)]))
    put_w(IW_CA_O, g("ca_wo")); put_b(IB_CA_O, g("ca_bo"))
    put_w(IW_L1, g("l1_w")); put_b(IB_L1, g("l1_b"))
    put_w(IW_L2, g("l2_w")); put_b(IB_L2, g("l2_b"))
    put_b(IB_N1G, g("n1_g")); put_b(IB_N1B, g("n1_b"))
    put_b(IB_N2G, g("n2_g")); put_b(IB_N2B, g("n2_b"))
    put_b(IB_N3G, g("n3_g")); put_b(IB_N3B, g("n3_b"))
    return jnp.asarray(w, dtype=jnp.bfloat16), jnp.asarray(b, dtype=jnp.float32)


def _head_block_mask(nheads, lk, d):
    """(nheads*lk, d) f32 mask with mask[g, c] = [g // lk == c // (d//nheads)]."""
    hd = d // nheads
    rows = np.arange(nheads * lk) // lk
    cols = np.arange(d) // hd
    return (rows[:, None] == cols[None, :]).astype(np.float32)


def _pick_batch_block(batch, L):
    """Rows per grid step: target >=256 rows to fill the MXU, cap ~512 rows so
    the step stays comfortably VMEM-resident (matters most on v7x's 64 MiB);
    never split a batch that is already below the row target."""
    target_rows, cap_rows = 256, 512
    bb_cap = max(1, min(batch, cap_rows // max(L, 1)))
    bb = 1
    for d in range(1, batch + 1):
        if batch % d == 0 and d <= bb_cap:
            bb = d
    if batch * L <= target_rows:
        bb = batch
    return bb


# ---------------------------------------------------------------------------
# wrapper
# ---------------------------------------------------------------------------
def simplr_decoder_layer(tgt, query_pos, memory, params,
                         memory_shape=None, memory_mask=None,
                         memory_start_index=None, memory_valid_ratios=None,
                         ref_windows=None, dn_attn_mask=None):
    """Returns (tgt_out, roi=None), matching forward_post with use_mask=False."""
    del memory_shape, memory_mask, memory_start_index  # unused (see TODO)
    del memory_valid_ratios, ref_windows, dn_attn_mask

    B, L, D = tgt.shape
    _, S, E = memory.shape
    assert D == DEC_DIM and E == ENC_DIM
    assert D % NHEAD_SA == 0 and D % NHEAD_CA == 0

    w_slab, b_slab = pack_params(params)
    # static block-diag / denominator masks, hoisted out of the kernel body
    mask = jnp.asarray(np.concatenate(
        [_head_block_mask(NHEAD_SA, L, D), _head_block_mask(NHEAD_CA, S, D)],
        axis=0))                                            # (8L + 4S, D) f32
    gt = NHEAD_SA * L + NHEAD_CA * S

    bb = _pick_batch_block(B, L)
    grid = B // bb

    out = pl.pallas_call(
        _layer_kernel,
        out_shape=jax.ShapeDtypeStruct((B, L, D), jnp.float32),
        grid_spec=pltpu.PrefetchScalarGridSpec(
            num_scalar_prefetch=0,
            grid=(grid,),
            in_specs=[
                pl.BlockSpec((bb, L, D), lambda i: (i, 0, 0)),
                pl.BlockSpec((bb, L, D), lambda i: (i, 0, 0)),
                pl.BlockSpec((bb, S, E), lambda i: (i, 0, 0)),
                pl.BlockSpec((NUM_W, 64, 128), lambda i: (0, 0, 0)),
                pl.BlockSpec((NUM_B, 128), lambda i: (0, 0)),
                pl.BlockSpec((gt, D), lambda i: (0, 0)),
            ],
            out_specs=pl.BlockSpec((bb, L, D), lambda i: (i, 0, 0)),
        ),
        compiler_params=pltpu.CompilerParams(
            dimension_semantics=("parallel",),
            vmem_limit_bytes=48 * 1024 * 1024),
    )(tgt, query_pos, memory, w_slab, b_slab, mask)
    return out, None


# ---------------------------------------------------------------------------
# pure-JAX reference (independent math: per-head loop, explicit scale, exact
# division, full f32) and deterministic synthetic parameter init
# ---------------------------------------------------------------------------
def _mha(q_in, k_in, v_in, wq, bq, wk, bk, wv, bv, wo, bo, nheads):
    q = jnp.dot(q_in, wq, preferred_element_type=jnp.float32) + bq
    k = jnp.dot(k_in, wk, preferred_element_type=jnp.float32) + bk
    v = jnp.dot(v_in, wv, preferred_element_type=jnp.float32) + bv
    d = q.shape[-1]
    hd = d // nheads
    scale = 1.0 / math.sqrt(hd)
    outs = []
    for h in range(nheads):
        qh = q[:, h * hd:(h + 1) * hd] * scale
        kh = k[:, h * hd:(h + 1) * hd]
        vh = v[:, h * hd:(h + 1) * hd]
        s = lax.dot_general(qh, kh, (((1,), (1,)), ((), ())),
                            preferred_element_type=jnp.float32)
        m = jnp.max(s, axis=-1, keepdims=True)
        e = jnp.exp(s - m)
        p = e / jnp.sum(e, axis=-1, keepdims=True)
        outs.append(jnp.dot(p, vh, preferred_element_type=jnp.float32))
    o = jnp.concatenate(outs, axis=-1)
    return jnp.dot(o, wo, preferred_element_type=jnp.float32) + bo


def _layer_math(x, pos, mem, p):
    qk = x + pos
    sa = _mha(qk, qk, x,
              p["sa_wq"], p["sa_bq"], p["sa_wk"], p["sa_bk"],
              p["sa_wv"], p["sa_bv"], p["sa_wo"], p["sa_bo"], NHEAD_SA)
    x = _layernorm(x + sa, p["n1_g"], p["n1_b"])
    ca = _mha(x + pos, mem, mem,
              p["ca_wq"], p["ca_bq"], p["ca_wk"], p["ca_bk"],
              p["ca_wv"], p["ca_bv"], p["ca_wo"], p["ca_bo"], NHEAD_CA)
    x = _layernorm(x + ca, p["n2_g"], p["n2_b"])
    h = jnp.maximum(
        jnp.dot(x, p["l1_w"], preferred_element_type=jnp.float32) + p["l1_b"], 0.0)
    f = jnp.dot(h, p["l2_w"], preferred_element_type=jnp.float32) + p["l2_b"]
    x = _layernorm(x + f, p["n3_g"], p["n3_b"])
    return x


def init_params(key):
    D, E, F = DEC_DIM, ENC_DIM, DIM_FF
    shapes = {
        "sa_wq": (D, D), "sa_bq": (1, D), "sa_wk": (D, D), "sa_bk": (1, D),
        "sa_wv": (D, D), "sa_bv": (1, D), "sa_wo": (D, D), "sa_bo": (1, D),
        "ca_wq": (D, D), "ca_bq": (1, D), "ca_wk": (E, D), "ca_bk": (1, D),
        "ca_wv": (E, D), "ca_bv": (1, D), "ca_wo": (D, D), "ca_bo": (1, D),
        "l1_w": (D, F), "l1_b": (1, F), "l2_w": (F, D), "l2_b": (1, D),
        "n1_g": (1, D), "n1_b": (1, D), "n2_g": (1, D), "n2_b": (1, D),
        "n3_g": (1, D), "n3_b": (1, D),
    }
    keys = jax.random.split(key, len(PARAM_NAMES))
    params = {}
    for name, k in zip(PARAM_NAMES, keys):
        shp = shapes[name]
        if name.startswith("n") and name.endswith("_g"):        # LayerNorm gamma
            params[name] = (1.0 + 0.02 * jax.random.normal(k, shp)).astype(jnp.float32)
        elif name.endswith("_b"):                                # biases / LN beta
            params[name] = (0.02 * jax.random.normal(k, shp)).astype(jnp.float32)
        else:                                                    # weight matrices
            fan_in = shp[0]
            params[name] = (jax.random.normal(k, shp) / math.sqrt(fan_in)).astype(jnp.float32)
    return params


def reference(tgt, query_pos, memory, params):
    return jax.vmap(lambda x, pos, mem: _layer_math(x, pos, mem, params))(
        tgt, query_pos, memory)


if __name__ == "__main__":
    key = jax.random.PRNGKey(0)
    k1, k2, k3, kp = jax.random.split(key, 4)

    B, L, S = 2, 16, 64   # batch, num queries, memory tokens (e.g. 8x8 map)
    tgt = jax.random.normal(k1, (B, L, DEC_DIM), dtype=jnp.float32)
    query_pos = jax.random.normal(k2, (B, L, DEC_DIM), dtype=jnp.float32)
    memory = jax.random.normal(k3, (B, S, ENC_DIM), dtype=jnp.float32)
    params = init_params(kp)

    out, roi = simplr_decoder_layer(tgt, query_pos, memory, params)
    out = jax.block_until_ready(out)

    ref = jax.block_until_ready(reference(tgt, query_pos, memory, params))
    # Kernel uses bf16 MXU operands (f32 accumulation, f32 LN/softmax) and an
    # approx reciprocal; compare against the full-f32 reference accordingly.
    np.testing.assert_allclose(np.asarray(out), np.asarray(ref), rtol=3e-2, atol=3e-2)
    assert roi is None
    print("KERNEL_OK")
</pallas_src>

<mosaic_0001>
module attributes {stable_mosaic.version = 11 : i64} {
  func.func @_layer_kernel(%arg0: i32, %arg1: memref<2x16x32xf32, #tpu.memory_space<vmem>>, %arg2: memref<2x16x32xf32, #tpu.memory_space<vmem>>, %arg3: memref<2x64x64xf32, #tpu.memory_space<vmem>>, %arg4: memref<7x64x128xbf16, #tpu.memory_space<vmem>>, %arg5: memref<13x128xf32, #tpu.memory_space<vmem>>, %arg6: memref<384x32xf32, #tpu.memory_space<vmem>>, %arg7: memref<2x16x32xf32, #tpu.memory_space<vmem>>) attributes {dimension_semantics = [#tpu.dimension_semantics<parallel>], iteration_bounds = array<i64: 1>, scalar_prefetch = 0 : i64, scratch_operands = 0 : i64, tpu.core_type = #tpu.core_type<tc>, window_params = [{transform_indices = @transform_0, window_bounds = array<i64: 2, 16, 32>}, {transform_indices = @transform_1, window_bounds = array<i64: 2, 16, 32>}, {transform_indices = @transform_2, window_bounds = array<i64: 2, 64, 64>}, {pipeline_mode = #tpu.pipeline_mode<synchronous>, transform_indices = @transform_3, window_bounds = array<i64: 7, 64, 128>}, {pipeline_mode = #tpu.pipeline_mode<synchronous>, transform_indices = @transform_4, window_bounds = array<i64: 13, 128>}, {pipeline_mode = #tpu.pipeline_mode<synchronous>, transform_indices = @transform_5, window_bounds = array<i64: 384, 32>}, {transform_indices = @transform_6, window_bounds = array<i64: 2, 16, 32>}]} {
    %c0 = arith.constant 0 : index
    %c0_0 = arith.constant 0 : index
    %0 = vector.load %arg6[%c0, %c0_0] : memref<384x32xf32, #tpu.memory_space<vmem>>, vector<128x32xf32>
    %c128 = arith.constant 128 : index
    %c0_1 = arith.constant 0 : index
    %1 = vector.load %arg6[%c128, %c0_1] : memref<384x32xf32, #tpu.memory_space<vmem>>, vector<256x32xf32>
    %c0_2 = arith.constant 0 : index
    %c0_3 = arith.constant 0 : index
    %c0_4 = arith.constant 0 : index
    %2 = vector.load %arg1[%c0_2, %c0_3, %c0_4] : memref<2x16x32xf32, #tpu.memory_space<vmem>>, vector<2x16x32xf32>
    %3 = vector.shape_cast %2 : vector<2x16x32xf32> to vector<32x32xf32>
    %c0_5 = arith.constant 0 : index
    %c0_6 = arith.constant 0 : index
    %c0_7 = arith.constant 0 : index
    %4 = vector.load %arg2[%c0_5, %c0_6, %c0_7] : memref<2x16x32xf32, #tpu.memory_space<vmem>>, vector<2x16x32xf32>
    %5 = vector.shape_cast %4 : vector<2x16x32xf32> to vector<32x32xf32>
    %c0_8 = arith.constant 0 : index
    %c0_9 = arith.constant 0 : index
    %c0_10 = arith.constant 0 : index
    %6 = vector.load %arg3[%c0_8, %c0_9, %c0_10] : memref<2x64x64xf32, #tpu.memory_space<vmem>>, vector<2x64x64xf32>
    %7 = vector.shape_cast %6 : vector<2x64x64xf32> to vector<128x64xf32>
    %8 = tpu.concatenate %3, %5 in 1 : vector<32x32xf32>, vector<32x32xf32> -> vector<32x64xf32>
    %9 = arith.truncf %8 : vector<32x64xf32> to vector<32x64xbf16>
    %c0_11 = arith.constant 0 : index
    %c0_12 = arith.constant 0 : index
    %c0_13 = arith.constant 0 : index
    %10 = vector.load %arg4[%c0_11, %c0_12, %c0_13] : memref<7x64x128xbf16, #tpu.memory_space<vmem>>, vector<1x64x96xbf16>
    %11 = vector.shape_cast %10 : vector<1x64x96xbf16> to vector<64x96xbf16>
    %cst = arith.constant dense<0.000000e+00> : vector<32x96xf32>
    %12 = tpu.matmul %9, %11, %cst {dimension_numbers = #tpu.dot_dimension_numbers<[1], [0], [0], [1], [0, 0, 1, 1], [], []>} : vector<32x64xbf16>, vector<64x96xbf16>, vector<32x96xf32> -> vector<32x96xf32>
    %c0_14 = arith.constant 0 : index
    %c0_15 = arith.constant 0 : index
    %13 = vector.load %arg5[%c0_14, %c0_15] : memref<13x128xf32, #tpu.memory_space<vmem>>, vector<1x96xf32>
    %14 = vector.broadcast %13 : vector<1x96xf32> to vector<32x96xf32>
    %15 = arith.addf %12, %14 : vector<32x96xf32>
    %16 = vector.extract_strided_slice %15 {offsets = [0, 0], sizes = [32, 32], strides = [1, 1]} : vector<32x96xf32> to vector<32x32xf32>
    %17 = vector.shape_cast %16 : vector<32x32xf32> to vector<2x16x32xf32>
    %18 = vector.extract_strided_slice %15 {offsets = [0, 32], sizes = [32, 32], strides = [1, 1]} : vector<32x96xf32> to vector<32x32xf32>
    %19 = vector.shape_cast %18 : vector<32x32xf32> to vector<2x16x32xf32>
    %20 = vector.extract_strided_slice %15 {offsets = [0, 64], sizes = [32, 32], strides = [1, 1]} : vector<32x96xf32> to vector<32x32xf32>
    %21 = vector.shape_cast %20 : vector<32x32xf32> to vector<2x16x32xf32>
    %22 = tpu.concatenate %19, %19, %19, %19, %19, %19, %19, %19 in 1 : vector<2x16x32xf32>, vector<2x16x32xf32>, vector<2x16x32xf32>, vector<2x16x32xf32>, vector<2x16x32xf32>, vector<2x16x32xf32>, vector<2x16x32xf32>, vector<2x16x32xf32> -> vector<2x128x32xf32>
    %23 = vector.shape_cast %0 : vector<128x32xf32> to vector<1x128x32xf32>
    %24 = vector.broadcast %23 : vector<1x128x32xf32> to vector<2x128x32xf32>
    %25 = arith.mulf %22, %24 : vector<2x128x32xf32>
    %26 = arith.truncf %25 : vector<2x128x32xf32> to vector<2x128x32xbf16>
    %27 = tpu.concatenate %21, %21, %21, %21, %21, %21, %21, %21 in 1 : vector<2x16x32xf32>, vector<2x16x32xf32>, vector<2x16x32xf32>, vector<2x16x32xf32>, vector<2x16x32xf32>, vector<2x16x32xf32>, vector<2x16x32xf32>, vector<2x16x32xf32> -> vector<2x128x32xf32>
    %28 = vector.shape_cast %0 : vector<128x32xf32> to vector<1x128x32xf32>
    %29 = vector.broadcast %28 : vector<1x128x32xf32> to vector<2x128x32xf32>
    %30 = arith.mulf %27, %29 : vector<2x128x32xf32>
    %31 = arith.truncf %30 : vector<2x128x32xf32> to vector<2x128x32xbf16>
    %32 = arith.truncf %17 : vector<2x16x32xf32> to vector<2x16x32xbf16>
    %cst_16 = arith.constant dense<0.000000e+00> : vector<2x16x128xf32>
    %33 = tpu.matmul %32, %26, %cst_16 {dimension_numbers = #tpu.dot_dimension_numbers<[2], [2], [1], [1], [0, 0, 0, 1, 1, 1], [0], [0]>} : vector<2x16x32xbf16>, vector<2x128x32xbf16>, vector<2x16x128xf32> -> vector<2x16x128xf32>
    %cst_17 = arith.constant dense<0xFF800000> : vector<2x16xf32>
    %34 = vector.multi_reduction <maximumf>, %33, %cst_17 [2] : vector<2x16x128xf32> to vector<2x16xf32>
    %35 = vector.shape_cast %34 : vector<2x16xf32> to vector<2x16x1xf32>
    %36 = vector.broadcast %35 : vector<2x16x1xf32> to vector<2x16x128xf32>
    %37 = arith.subf %33, %36 : vector<2x16x128xf32>
    %38 = math.exp %37 : vector<2x16x128xf32>
    %39 = arith.truncf %38 : vector<2x16x128xf32> to vector<2x16x128xbf16>
    %cst_18 = arith.constant dense<0.000000e+00> : vector<2x16x32xf32>
    %40 = tpu.matmul %39, %31, %cst_18 {dimension_numbers = #tpu.dot_dimension_numbers<[2], [1], [1], [2], [0, 0, 0, 1, 1, 2], [0], [0]>} : vector<2x16x128xbf16>, vector<2x128x32xbf16>, vector<2x16x32xf32> -> vector<2x16x32xf32>
    %41 = vector.shape_cast %38 : vector<2x16x128xf32> to vector<32x128xf32>
    %cst_19 = arith.constant dense<0.000000e+00> : vector<32x32xf32>
    %42 = tpu.matmul %41, %0, %cst_19 {dimension_numbers = #tpu.dot_dimension_numbers<[1], [0], [0], [1], [0, 0, 1, 1], [], []>} : vector<32x128xf32>, vector<128x32xf32>, vector<32x32xf32> -> vector<32x32xf32>
    %43 = vector.shape_cast %42 : vector<32x32xf32> to vector<2x16x32xf32>
    %cst_20 = arith.constant 9.99999968E-21 : f32
    %44 = vector.broadcast %cst_20 : f32 to vector<2x16x32xf32>
    %45 = arith.maximumf %43, %44 : vector<2x16x32xf32>
    %46 = tpu.reciprocal %45 {approx = true} : vector<2x16x32xf32> -> vector<2x16x32xf32>
    %47 = arith.mulf %40, %46 : vector<2x16x32xf32>
    %48 = vector.shape_cast %47 : vector<2x16x32xf32> to vector<32x32xf32>
    %49 = arith.truncf %48 : vector<32x32xf32> to vector<32x32xbf16>
    %c1 = arith.constant 1 : index
    %c0_21 = arith.constant 0 : index
    %c0_22 = arith.constant 0 : index
    %50 = vector.load %arg4[%c1, %c0_21, %c0_22] : memref<7x64x128xbf16, #tpu.memory_space<vmem>>, vector<1x32x32xbf16>
    %51 = vector.shape_cast %50 : vector<1x32x32xbf16> to vector<32x32xbf16>
    %cst_23 = arith.constant dense<0.000000e+00> : vector<32x32xf32>
    %52 = tpu.matmul %49, %51, %cst_23 {dimension_numbers = #tpu.dot_dimension_numbers<[1], [0], [0], [1], [0, 0, 1, 1], [], []>} : vector<32x32xbf16>, vector<32x32xbf16>, vector<32x32xf32> -> vector<32x32xf32>
    %c1_24 = arith.constant 1 : index
    %c0_25 = arith.constant 0 : index
    %53 = vector.load %arg5[%c1_24, %c0_25] : memref<13x128xf32, #tpu.memory_space<vmem>>, vector<1x32xf32>
    %54 = vector.broadcast %53 : vector<1x32xf32> to vector<32x32xf32>
    %55 = arith.addf %52, %54 : vector<32x32xf32>
    %56 = arith.addf %3, %55 : vector<32x32xf32>
    %c7 = arith.constant 7 : index
    %c0_26 = arith.constant 0 : index
    %57 = vector.load %arg5[%c7, %c0_26] : memref<13x128xf32, #tpu.memory_space<vmem>>, vector<1x32xf32>
    %c8 = arith.constant 8 : index
    %c0_27 = arith.constant 0 : index
    %58 = vector.load %arg5[%c8, %c0_27] : memref<13x128xf32, #tpu.memory_space<vmem>>, vector<1x32xf32>
    %cst_28 = arith.constant dense<0.000000e+00> : vector<32xf32>
    %59 = vector.multi_reduction <add>, %56, %cst_28 [1] : vector<32x32xf32> to vector<32xf32>
    %60 = vector.shape_cast %59 : vector<32xf32> to vector<32x1xf32>
    %cst_29 = arith.constant 3.200000e+01 : f32
    %61 = vector.broadcast %cst_29 : f32 to vector<32x1xf32>
    %62 = arith.divf %60, %61 : vector<32x1xf32>
    %63 = vector.broadcast %62 : vector<32x1xf32> to vector<32x32xf32>
    %64 = arith.subf %56, %63 : vector<32x32xf32>
    %65 = arith.mulf %64, %64 : vector<32x32xf32>
    %cst_30 = arith.constant dense<0.000000e+00> : vector<32xf32>
    %66 = vector.multi_reduction <add>, %65, %cst_30 [1] : vector<32x32xf32> to vector<32xf32>
    %67 = vector.shape_cast %66 : vector<32xf32> to vector<32x1xf32>
    %cst_31 = arith.constant 3.200000e+01 : f32
    %68 = vector.broadcast %cst_31 : f32 to vector<32x1xf32>
    %69 = arith.divf %67, %68 : vector<32x1xf32>
    %cst_32 = arith.constant 9.99999974E-6 : f32
    %70 = vector.broadcast %cst_32 : f32 to vector<32x1xf32>
    %71 = arith.addf %69, %70 : vector<32x1xf32>
    %72 = math.rsqrt %71 : vector<32x1xf32>
    %73 = vector.broadcast %72 : vector<32x1xf32> to vector<32x32xf32>
    %74 = arith.mulf %64, %73 : vector<32x32xf32>
    %75 = vector.broadcast %57 : vector<1x32xf32> to vector<32x32xf32>
    %76 = arith.mulf %74, %75 : vector<32x32xf32>
    %77 = vector.broadcast %58 : vector<1x32xf32> to vector<32x32xf32>
    %78 = arith.addf %76, %77 : vector<32x32xf32>
    %79 = arith.addf %78, %5 : vector<32x32xf32>
    %80 = arith.truncf %79 : vector<32x32xf32> to vector<32x32xbf16>
    %c2 = arith.constant 2 : index
    %c0_33 = arith.constant 0 : index
    %c0_34 = arith.constant 0 : index
    %81 = vector.load %arg4[%c2, %c0_33, %c0_34] : memref<7x64x128xbf16, #tpu.memory_space<vmem>>, vector<1x32x32xbf16>
    %82 = vector.shape_cast %81 : vector<1x32x32xbf16> to vector<32x32xbf16>
    %cst_35 = arith.constant dense<0.000000e+00> : vector<32x32xf32>
    %83 = tpu.matmul %80, %82, %cst_35 {dimension_numbers = #tpu.dot_dimension_numbers<[1], [0], [0], [1], [0, 0, 1, 1], [], []>} : vector<32x32xbf16>, vector<32x32xbf16>, vector<32x32xf32> -> vector<32x32xf32>
    %c2_36 = arith.constant 2 : index
    %c0_37 = arith.constant 0 : index
    %84 = vector.load %arg5[%c2_36, %c0_37] : memref<13x128xf32, #tpu.memory_space<vmem>>, vector<1x32xf32>
    %85 = vector.broadcast %84 : vector<1x32xf32> to vector<32x32xf32>
    %86 = arith.addf %83, %85 : vector<32x32xf32>
    %87 = arith.truncf %7 : vector<128x64xf32> to vector<128x64xbf16>
    %c3 = arith.constant 3 : index
    %c0_38 = arith.constant 0 : index
    %c0_39 = arith.constant 0 : index
    %88 = vector.load %arg4[%c3, %c0_38, %c0_39] : memref<7x64x128xbf16, #tpu.memory_space<vmem>>, vector<1x64x64xbf16>
    %89 = vector.shape_cast %88 : vector<1x64x64xbf16> to vector<64x64xbf16>
    %cst_40 = arith.constant dense<0.000000e+00> : vector<128x64xf32>
    %90 = tpu.matmul %87, %89, %cst_40 {dimension_numbers = #tpu.dot_dimension_numbers<[1], [0], [0], [1], [0, 0, 1, 1], [], []>} : vector<128x64xbf16>, vector<64x64xbf16>, vector<128x64xf32> -> vector<128x64xf32>
    %c3_41 = arith.constant 3 : index
    %c0_42 = arith.constant 0 : index
    %91 = vector.load %arg5[%c3_41, %c0_42] : memref<13x128xf32, #tpu.memory_space<vmem>>, vector<1x64xf32>
    %92 = vector.broadcast %91 : vector<1x64xf32> to vector<128x64xf32>
    %93 = arith.addf %90, %92 : vector<128x64xf32>
    %94 = vector.shape_cast %86 : vector<32x32xf32> to vector<2x16x32xf32>
    %95 = vector.extract_strided_slice %93 {offsets = [0, 0], sizes = [128, 32], strides = [1, 1]} : vector<128x64xf32> to vector<128x32xf32>
    %96 = vector.shape_cast %95 : vector<128x32xf32> to vector<2x64x32xf32>
    %97 = vector.extract_strided_slice %93 {offsets = [0, 32], sizes = [128, 32], strides = [1, 1]} : vector<128x64xf32> to vector<128x32xf32>
    %98 = vector.shape_cast %97 : vector<128x32xf32> to vector<2x64x32xf32>
    %99 = tpu.concatenate %96, %96, %96, %96 in 1 : vector<2x64x32xf32>, vector<2x64x32xf32>, vector<2x64x32xf32>, vector<2x64x32xf32> -> vector<2x256x32xf32>
    %100 = vector.shape_cast %1 : vector<256x32xf32> to vector<1x256x32xf32>
    %101 = vector.broadcast %100 : vector<1x256x32xf32> to vector<2x256x32xf32>
    %102 = arith.mulf %99, %101 : vector<2x256x32xf32>
    %103 = arith.truncf %102 : vector<2x256x32xf32> to vector<2x256x32xbf16>
    %104 = tpu.concatenate %98, %98, %98, %98 in 1 : vector<2x64x32xf32>, vector<2x64x32xf32>, vector<2x64x32xf32>, vector<2x64x32xf32> -> vector<2x256x32xf32>
    %105 = vector.shape_cast %1 : vector<256x32xf32> to vector<1x256x32xf32>
    %106 = vector.broadcast %105 : vector<1x256x32xf32> to vector<2x256x32xf32>
    %107 = arith.mulf %104, %106 : vector<2x256x32xf32>
    %108 = arith.truncf %107 : vector<2x256x32xf32> to vector<2x256x32xbf16>
    %109 = arith.truncf %94 : vector<2x16x32xf32> to vector<2x16x32xbf16>
    %cst_43 = arith.constant dense<0.000000e+00> : vector<2x16x256xf32>
    %110 = tpu.matmul %109, %103, %cst_43 {dimension_numbers = #tpu.dot_dimension_numbers<[2], [2], [1], [1], [0, 0, 0, 1, 1, 1], [0], [0]>} : vector<2x16x32xbf16>, vector<2x256x32xbf16>, vector<2x16x256xf32> -> vector<2x16x256xf32>
    %cst_44 = arith.constant dense<0xFF800000> : vector<2x16xf32>
    %111 = vector.multi_reduction <maximumf>, %110, %cst_44 [2] : vector<2x16x256xf32> to vector<2x16xf32>
    %112 = vector.shape_cast %111 : vector<2x16xf32> to vector<2x16x1xf32>
    %113 = vector.broadcast %112 : vector<2x16x1xf32> to vector<2x16x256xf32>
    %114 = arith.subf %110, %113 : vector<2x16x256xf32>
    %115 = math.exp %114 : vector<2x16x256xf32>
    %116 = arith.truncf %115 : vector<2x16x256xf32> to vector<2x16x256xbf16>
    %cst_45 = arith.constant dense<0.000000e+00> : vector<2x16x32xf32>
    %117 = tpu.matmul %116, %108, %cst_45 {dimension_numbers = #tpu.dot_dimension_numbers<[2], [1], [1], [2], [0, 0, 0, 1, 1, 2], [0], [0]>} : vector<2x16x256xbf16>, vector<2x256x32xbf16>, vector<2x16x32xf32> -> vector<2x16x32xf32>
    %118 = vector.shape_cast %115 : vector<2x16x256xf32> to vector<32x256xf32>
    %cst_46 = arith.constant dense<0.000000e+00> : vector<32x32xf32>
    %119 = tpu.matmul %118, %1, %cst_46 {dimension_numbers = #tpu.dot_dimension_numbers<[1], [0], [0], [1], [0, 0, 1, 1], [], []>} : vector<32x256xf32>, vector<256x32xf32>, vector<32x32xf32> -> vector<32x32xf32>
    %120 = vector.shape_cast %119 : vector<32x32xf32> to vector<2x16x32xf32>
    %cst_47 = arith.constant 9.99999968E-21 : f32
    %121 = vector.broadcast %cst_47 : f32 to vector<2x16x32xf32>
    %122 = arith.maximumf %120, %121 : vector<2x16x32xf32>
    %123 = tpu.reciprocal %122 {approx = true} : vector<2x16x32xf32> -> vector<2x16x32xf32>
    %124 = arith.mulf %117, %123 : vector<2x16x32xf32>
    %125 = vector.shape_cast %124 : vector<2x16x32xf32> to vector<32x32xf32>
    %126 = arith.truncf %125 : vector<32x32xf32> to vector<32x32xbf16>
    %c4 = arith.constant 4 : index
    %c0_48 = arith.constant 0 : index
    %c0_49 = arith.constant 0 : index
    %127 = vector.load %arg4[%c4, %c0_48, %c0_49] : memref<7x64x128xbf16, #tpu.memory_space<vmem>>, vector<1x32x32xbf16>
    %128 = vector.shape_cast %127 : vector<1x32x32xbf16> to vector<32x32xbf16>
    %cst_50 = arith.constant dense<0.000000e+00> : vector<32x32xf32>
    %129 = tpu.matmul %126, %128, %cst_50 {dimension_numbers = #tpu.dot_dimension_numbers<[1], [0], [0], [1], [0, 0, 1, 1], [], []>} : vector<32x32xbf16>, vector<32x32xbf16>, vector<32x32xf32> -> vector<32x32xf32>
    %c4_51 = arith.constant 4 : index
    %c0_52 = arith.constant 0 : index
    %130 = vector.load %arg5[%c4_51, %c0_52] : memref<13x128xf32, #tpu.memory_space<vmem>>, vector<1x32xf32>
    %131 = vector.broadcast %130 : vector<1x32xf32> to vector<32x32xf32>
    %132 = arith.addf %129, %131 : vector<32x32xf32>
    %133 = arith.addf %78, %132 : vector<32x32xf32>
    %c9 = arith.constant 9 : index
    %c0_53 = arith.constant 0 : index
    %134 = vector.load %arg5[%c9, %c0_53] : memref<13x128xf32, #tpu.memory_space<vmem>>, vector<1x32xf32>
    %c10 = arith.constant 10 : index
    %c0_54 = arith.constant 0 : index
    %135 = vector.load %arg5[%c10, %c0_54] : memref<13x128xf32, #tpu.memory_space<vmem>>, vector<1x32xf32>
    %cst_55 = arith.constant dense<0.000000e+00> : vector<32xf32>
    %136 = vector.multi_reduction <add>, %133, %cst_55 [1] : vector<32x32xf32> to vector<32xf32>
    %137 = vector.shape_cast %136 : vector<32xf32> to vector<32x1xf32>
    %cst_56 = arith.constant 3.200000e+01 : f32
    %138 = vector.broadcast %cst_56 : f32 to vector<32x1xf32>
    %139 = arith.divf %137, %138 : vector<32x1xf32>
    %140 = vector.broadcast %139 : vector<32x1xf32> to vector<32x32xf32>
    %141 = arith.subf %133, %140 : vector<32x32xf32>
    %142 = arith.mulf %141, %141 : vector<32x32xf32>
    %cst_57 = arith.constant dense<0.000000e+00> : vector<32xf32>
    %143 = vector.multi_reduction <add>, %142, %cst_57 [1] : vector<32x32xf32> to vector<32xf32>
    %144 = vector.shape_cast %143 : vector<32xf32> to vector<32x1xf32>
    %cst_58 = arith.constant 3.200000e+01 : f32
    %145 = vector.broadcast %cst_58 : f32 to vector<32x1xf32>
    %146 = arith.divf %144, %145 : vector<32x1xf32>
    %cst_59 = arith.constant 9.99999974E-6 : f32
    %147 = vector.broadcast %cst_59 : f32 to vector<32x1xf32>
    %148 = arith.addf %146, %147 : vector<32x1xf32>
    %149 = math.rsqrt %148 : vector<32x1xf32>
    %150 = vector.broadcast %149 : vector<32x1xf32> to vector<32x32xf32>
    %151 = arith.mulf %141, %150 : vector<32x32xf32>
    %152 = vector.broadcast %134 : vector<1x32xf32> to vector<32x32xf32>
    %153 = arith.mulf %151, %152 : vector<32x32xf32>
    %154 = vector.broadcast %135 : vector<1x32xf32> to vector<32x32xf32>
    %155 = arith.addf %153, %154 : vector<32x32xf32>
    %156 = arith.truncf %155 : vector<32x32xf32> to vector<32x32xbf16>
    %c5 = arith.constant 5 : index
    %c0_60 = arith.constant 0 : index
    %c0_61 = arith.constant 0 : index
    %157 = vector.load %arg4[%c5, %c0_60, %c0_61] : memref<7x64x128xbf16, #tpu.memory_space<vmem>>, vector<1x32x64xbf16>
    %158 = vector.shape_cast %157 : vector<1x32x64xbf16> to vector<32x64xbf16>
    %cst_62 = arith.constant dense<0.000000e+00> : vector<32x64xf32>
    %159 = tpu.matmul %156, %158, %cst_62 {dimension_numbers = #tpu.dot_dimension_numbers<[1], [0], [0], [1], [0, 0, 1, 1], [], []>} : vector<32x32xbf16>, vector<32x64xbf16>, vector<32x64xf32> -> vector<32x64xf32>
    %c5_63 = arith.constant 5 : index
    %c0_64 = arith.constant 0 : index
    %160 = vector.load %arg5[%c5_63, %c0_64] : memref<13x128xf32, #tpu.memory_space<vmem>>, vector<1x64xf32>
    %161 = vector.broadcast %160 : vector<1x64xf32> to vector<32x64xf32>
    %162 = arith.addf %159, %161 : vector<32x64xf32>
    %cst_65 = arith.constant 0.000000e+00 : f32
    %163 = vector.broadcast %cst_65 : f32 to vector<32x64xf32>
    %164 = arith.maximumf %162, %163 : vector<32x64xf32>
    %165 = arith.truncf %164 : vector<32x64xf32> to vector<32x64xbf16>
    %c6 = arith.constant 6 : index
    %c0_66 = arith.constant 0 : index
    %c0_67 = arith.constant 0 : index
    %166 = vector.load %arg4[%c6, %c0_66, %c0_67] : memref<7x64x128xbf16, #tpu.memory_space<vmem>>, vector<1x64x32xbf16>
    %167 = vector.shape_cast %166 : vector<1x64x32xbf16> to vector<64x32xbf16>
    %cst_68 = arith.constant dense<0.000000e+00> : vector<32x32xf32>
    %168 = tpu.matmul %165, %167, %cst_68 {dimension_numbers = #tpu.dot_dimension_numbers<[1], [0], [0], [1], [0, 0, 1, 1], [], []>} : vector<32x64xbf16>, vector<64x32xbf16>, vector<32x32xf32> -> vector<32x32xf32>
    %c6_69 = arith.constant 6 : index
    %c0_70 = arith.constant 0 : index
    %169 = vector.load %arg5[%c6_69, %c0_70] : memref<13x128xf32, #tpu.memory_space<vmem>>, vector<1x32xf32>
    %170 = vector.broadcast %169 : vector<1x32xf32> to vector<32x32xf32>
    %171 = arith.addf %168, %170 : vector<32x32xf32>
    %172 = arith.addf %155, %171 : vector<32x32xf32>
    %c11 = arith.constant 11 : index
    %c0_71 = arith.constant 0 : index
    %173 = vector.load %arg5[%c11, %c0_71] : memref<13x128xf32, #tpu.memory_space<vmem>>, vector<1x32xf32>
    %c12 = arith.constant 12 : index
    %c0_72 = arith.constant 0 : index
    %174 = vector.load %arg5[%c12, %c0_72] : memref<13x128xf32, #tpu.memory_space<vmem>>, vector<1x32xf32>
    %cst_73 = arith.constant dense<0.000000e+00> : vector<32xf32>
    %175 = vector.multi_reduction <add>, %172, %cst_73 [1] : vector<32x32xf32> to vector<32xf32>
    %176 = vector.shape_cast %175 : vector<32xf32> to vector<32x1xf32>
    %cst_74 = arith.constant 3.200000e+01 : f32
    %177 = vector.broadcast %cst_74 : f32 to vector<32x1xf32>
    %178 = arith.divf %176, %177 : vector<32x1xf32>
    %179 = vector.broadcast %178 : vector<32x1xf32> to vector<32x32xf32>
    %180 = arith.subf %172, %179 : vector<32x32xf32>
    %181 = arith.mulf %180, %180 : vector<32x32xf32>
    %cst_75 = arith.constant dense<0.000000e+00> : vector<32xf32>
    %182 = vector.multi_reduction <add>, %181, %cst_75 [1] : vector<32x32xf32> to vector<32xf32>
    %183 = vector.shape_cast %182 : vector<32xf32> to vector<32x1xf32>
    %cst_76 = arith.constant 3.200000e+01 : f32
    %184 = vector.broadcast %cst_76 : f32 to vector<32x1xf32>
    %185 = arith.divf %183, %184 : vector<32x1xf32>
    %cst_77 = arith.constant 9.99999974E-6 : f32
    %186 = vector.broadcast %cst_77 : f32 to vector<32x1xf32>
    %187 = arith.addf %185, %186 : vector<32x1xf32>
    %188 = math.rsqrt %187 : vector<32x1xf32>
    %189 = vector.broadcast %188 : vector<32x1xf32> to vector<32x32xf32>
    %190 = arith.mulf %180, %189 : vector<32x32xf32>
    %191 = vector.broadcast %173 : vector<1x32xf32> to vector<32x32xf32>
    %192 = arith.mulf %190, %191 : vector<32x32xf32>
    %193 = vector.broadcast %174 : vector<1x32xf32> to vector<32x32xf32>
    %194 = arith.addf %192, %193 : vector<32x32xf32>
    %195 = vector.shape_cast %194 : vector<32x32xf32> to vector<2x16x32xf32>
    %c0_78 = arith.constant 0 : index
    %c0_79 = arith.constant 0 : index
    %c0_80 = arith.constant 0 : index
    %196 = vector.load %arg7[%c0_78, %c0_79, %c0_80] : memref<2x16x32xf32, #tpu.memory_space<vmem>>, vector<2x16x32xf32>
    tpu.vector_store %arg7[%c0_78, %c0_79, %c0_80], %195 {strides = array<i32>} : memref<2x16x32xf32, #tpu.memory_space<vmem>>, vector<2x16x32xf32>,
    return
  }
  func.func @transform_0(%arg0: i32) -> (i32, i32, i32) {
    %c0_i32 = arith.constant 0 : i32
    %c0_i32_0 = arith.constant 0 : i32
    %c0_i32_1 = arith.constant 0 : i32
    return %arg0, %c0_i32, %c0_i32_0 : i32, i32, i32
  }
  func.func @transform_1(%arg0: i32) -> (i32, i32, i32) {
    %c0_i32 = arith.constant 0 : i32
    %c0_i32_0 = arith.constant 0 : i32
    %c0_i32_1 = arith.constant 0 : i32
    return %arg0, %c0_i32, %c0_i32_0 : i32, i32, i32
  }
  func.func @transform_2(%arg0: i32) -> (i32, i32, i32) {
    %c0_i32 = arith.constant 0 : i32
    %c0_i32_0 = arith.constant 0 : i32
    %c0_i32_1 = arith.constant 0 : i32
    return %arg0, %c0_i32, %c0_i32_0 : i32, i32, i32
  }
  func.func @transform_3(%arg0: i32) -> (i32, i32, i32) {
    %c0_i32 = arith.constant 0 : i32
    %c0_i32_0 = arith.constant 0 : i32
    %c0_i32_1 = arith.constant 0 : i32
    %c0_i32_2 = arith.constant 0 : i32
    return %c0_i32, %c0_i32_0, %c0_i32_1 : i32, i32, i32
  }
  func.func @transform_4(%arg0: i32) -> (i32, i32) {
    %c0_i32 = arith.constant 0 : i32
    %c0_i32_0 = arith.constant 0 : i32
    %c0_i32_1 = arith.constant 0 : i32
    return %c0_i32, %c0_i32_0 : i32, i32
  }
  func.func @transform_5(%arg0: i32) -> (i32, i32) {
    %c0_i32 = arith.constant 0 : i32
    %c0_i32_0 = arith.constant 0 : i32
    %c0_i32_1 = arith.constant 0 : i32
    return %c0_i32, %c0_i32_0 : i32, i32
  }
  func.func @transform_6(%arg0: i32) -> (i32, i32, i32) {
    %c0_i32 = arith.constant 0 : i32
    %c0_i32_0 = arith.constant 0 : i32
    %c0_i32_1 = arith.constant 0 : i32
    return %arg0, %c0_i32, %c0_i32_0 : i32, i32, i32
  }
}

</mosaic_0001>

<llo_original>
// kernel: tpu_custom_call.1
$region0: #{tpu_custom_call.1}
  #allocation0 [shape = 'u32[]', space=smem, size = 0x4, offset = 0x4, fixed_abs, tag = 'smem constant byte address 0x4 - core index']
  #allocation1 [shape = 'u32[144,128]{1,0:T(1,128)}', space=vmem, size = 0x12000, scoped, tag = 'internal scratch']
  %s0 = inlined_call_operand.vmem [shape: f32[2,16,32], index: 0, kind: input, shape index: {}]
  %s1 = inlined_call_operand.vmem [shape: f32[2,16,32], index: 1, kind: input, shape index: {}]
  %s2 = inlined_call_operand.vmem [shape: f32[2,64,64], index: 2, kind: input, shape index: {}]
  %s3 = inlined_call_operand.vmem [shape: bf16[7,64,128], index: 3, kind: input, shape index: {}]
  %s4 = inlined_call_operand.vmem [shape: f32[13,128], index: 4, kind: input, shape index: {}]
  %s5 = inlined_call_operand.vmem [shape: f32[384,32], index: 5, kind: input, shape index: {}]
  %s6 = inlined_call_operand.hbm [shape: f32[2,16,32], index: 6, kind: output, shape index: {}]
  %s7 = sld [smem:[#allocation0]]
  $region34: #{tpu_custom_call.1} parent=0
    _
  %s9 = ssub.s32 1, %s7
  %s10 = scalar_select 0, %s9, %s7
  $region1: #{tpu_custom_call.1} parent=0
    #allocation2 [shape = 'u8[16384]{0}', space=vmem, size = 0x4000, scoped, tag = 'output window, operand 0, single buffered']
    #allocation3 [shape = 's32[1]{0}', space=sflag, size = 0x4, scoped, tag = 'scoped memory for tpu_custom_call.1']
    %11 = vsyncpa [#allocation3], 0
    // Predicated region
    $region2: #{tpu_custom_call.1} parent=1 // pred_check
      _
    $region3: #{tpu_custom_call.1} parent=1 // pred_check_branch
      %13 = sbr.rel (0) target = $region5
    $region4: #{tpu_custom_call.1} parent=1 // pred_region
      _
    $region5: #{tpu_custom_call.1} parent=1 // pred_fallthru
      _
    // Predicated region
    $region6: #{tpu_custom_call.1} parent=1 // pred_check
      _
    $region7: #{tpu_custom_call.1} parent=1 // pred_check_branch
      %15 = sbr.rel (0) target = $region9
    $region8: #{tpu_custom_call.1} parent=1 // pred_region
      _
    $region9: #{tpu_custom_call.1} parent=1 // pred_fallthru
      _
    // Predicated region
    $region10: #{tpu_custom_call.1} parent=1 // pred_check
      _
    $region11: #{tpu_custom_call.1} parent=1 // pred_check_branch
      %17 = sbr.rel (0) target = $region13
    $region12: #{tpu_custom_call.1} parent=1 // pred_region
      _
    $region13: #{tpu_custom_call.1} parent=1 // pred_fallthru
      _
    // Predicated region
    $region14: #{tpu_custom_call.1} parent=1 // pred_check
      _
    $region15: #{tpu_custom_call.1} parent=1 // pred_check_branch
      %19 = sbr.rel (0) target = $region17
    $region16: #{tpu_custom_call.1} parent=1 // pred_region
      _
    $region17: #{tpu_custom_call.1} parent=1 // pred_fallthru
      _
    // Predicated region
    $region18: #{tpu_custom_call.1} parent=1 // pred_check
      _
    $region19: #{tpu_custom_call.1} parent=1 // pred_check_branch
      %21 = sbr.rel (0) target = $region21
    $region20: #{tpu_custom_call.1} parent=1 // pred_region
      _
    $region21: #{tpu_custom_call.1} parent=1 // pred_fallthru
      _
    // Predicated region
    $region22: #{tpu_custom_call.1} parent=1 // pred_check
      _
    $region23: #{tpu_custom_call.1} parent=1 // pred_check_branch
      %23 = sbr.rel (0) target = $region25
    $region24: #{tpu_custom_call.1} parent=1 // pred_region
      _
    $region25: #{tpu_custom_call.1} parent=1 // pred_fallthru
      _
    %v25 = vld [vmem:[%s5] sm:$0xff]
    %v26 = vld [vmem:[%s5 + $0x8] sm:$0xff]
    %v27 = vld [vmem:[%s5 + $0x10] sm:$0xff]
    %v28 = vld [vmem:[%s5 + $0x18] sm:$0xff]
    %v29 = vld [vmem:[%s5 + $0x20] sm:$0xff]
    %v30 = vld [vmem:[%s5 + $0x28] sm:$0xff]
    %v31 = vld [vmem:[%s5 + $0x30] sm:$0xff]
    %v32 = vld [vmem:[%s5 + $0x38] sm:$0xff]
    %v33 = vld [vmem:[%s5 + $0x40] sm:$0xff]
    %v34 = vld [vmem:[%s5 + $0x48] sm:$0xff]
    %v35 = vld [vmem:[%s5 + $0x50] sm:$0xff]
    %v36 = vld [vmem:[%s5 + $0x58] sm:$0xff]
    %v37 = vld [vmem:[%s5 + $0x60] sm:$0xff]
    %v38 = vld [vmem:[%s5 + $0x68] sm:$0xff]
    %v39 = vld [vmem:[%s5 + $0x70] sm:$0xff]
    %v40 = vld [vmem:[%s5 + $0x78] sm:$0xff]
    %v41 = vld [vmem:[%s5 + $0x80] sm:$0xff]
    %v42 = vld [vmem:[%s5 + $0x88] sm:$0xff]
    %v43 = vld [vmem:[%s5 + $0x90] sm:$0xff]
    %v44 = vld [vmem:[%s5 + $0x98] sm:$0xff]
    %v45 = vld [vmem:[%s5 + $0xa0] sm:$0xff]
    %v46 = vld [vmem:[%s5 + $0xa8] sm:$0xff]
    %v47 = vld [vmem:[%s5 + $0xb0] sm:$0xff]
    %v48 = vld [vmem:[%s5 + $0xb8] sm:$0xff]
    %v49 = vld [vmem:[%s5 + $0xc0] sm:$0xff]
    %v50 = vld [vmem:[%s5 + $0xc8] sm:$0xff]
    %v51 = vld [vmem:[%s5 + $0xd0] sm:$0xff]
    %v52 = vld [vmem:[%s5 + $0xd8] sm:$0xff]
    %v53 = vld [vmem:[%s5 + $0xe0] sm:$0xff]
    %v54 = vld [vmem:[%s5 + $0xe8] sm:$0xff]
    %v55 = vld [vmem:[%s5 + $0xf0] sm:$0xff]
    %v56 = vld [vmem:[%s5 + $0xf8] sm:$0xff]
    %v57 = vld [vmem:[%s5 + $0x100] sm:$0xff]
    %v58 = vld [vmem:[%s5 + $0x108] sm:$0xff]
    %v59 = vld [vmem:[%s5 + $0x110] sm:$0xff]
    %v60 = vld [vmem:[%s5 + $0x118] sm:$0xff]
    %v61 = vld [vmem:[%s5 + $0x120] sm:$0xff]
    %v62 = vld [vmem:[%s5 + $0x128] sm:$0xff]
    %v63 = vld [vmem:[%s5 + $0x130] sm:$0xff]
    %v64 = vld [vmem:[%s5 + $0x138] sm:$0xff]
    %v65 = vld [vmem:[%s5 + $0x140] sm:$0xff]
    %v66 = vld [vmem:[%s5 + $0x148] sm:$0xff]
    %v67 = vld [vmem:[%s5 + $0x150] sm:$0xff]
    %v68 = vld [vmem:[%s5 + $0x158] sm:$0xff]
    %v69 = vld [vmem:[%s5 + $0x160] sm:$0xff]
    %v70 = vld [vmem:[%s5 + $0x168] sm:$0xff]
    %v71 = vld [vmem:[%s5 + $0x170] sm:$0xff]
    %v72 = vld [vmem:[%s5 + $0x178] sm:$0xff]
    %v73 = vld [vmem:[%s0] sm:$0xff]
    %v74 = vld [vmem:[%s0 + $0x8] sm:$0xff]
    %v75 = vld [vmem:[%s0 + $0x10] sm:$0xff]
    %v76 = vld [vmem:[%s0 + $0x18] sm:$0xff]
    %v77 = vld [vmem:[%s1] sm:$0xff]
    %v78 = vld [vmem:[%s1 + $0x8] sm:$0xff]
    %v79 = vld [vmem:[%s1 + $0x10] sm:$0xff]
    %v80 = vld [vmem:[%s1 + $0x18] sm:$0xff]
    %v81 = vld [vmem:[%s2] sm:$0xff]
    %v82 = vld [vmem:[%s2 + $0x8] sm:$0xff]
    %v83 = vld [vmem:[%s2 + $0x10] sm:$0xff]
    %v84 = vld [vmem:[%s2 + $0x18] sm:$0xff]
    %v85 = vld [vmem:[%s2 + $0x20] sm:$0xff]
    %v86 = vld [vmem:[%s2 + $0x28] sm:$0xff]
    %v87 = vld [vmem:[%s2 + $0x30] sm:$0xff]
    %v88 = vld [vmem:[%s2 + $0x38] sm:$0xff]
    %v89 = vld [vmem:[%s2 + $0x40] sm:$0xff]
    %v90 = vld [vmem:[%s2 + $0x48] sm:$0xff]
    %v91 = vld [vmem:[%s2 + $0x50] sm:$0xff]
    %v92 = vld [vmem:[%s2 + $0x58] sm:$0xff]
    %v93 = vld [vmem:[%s2 + $0x60] sm:$0xff]
    %v94 = vld [vmem:[%s2 + $0x68] sm:$0xff]
    %v95 = vld [vmem:[%s2 + $0x70] sm:$0xff]
    %v96 = vld [vmem:[%s2 + $0x78] sm:$0xff]
    %101 = vrot.lane.b32.xlu0 %v77, 32
    %v102 = vpop.permute.xlu0 %101
    %103 = vrot.lane.b32.xlu0 %v78, 32
    %v104 = vpop.permute.xlu0 %103
    %105 = vrot.lane.b32.xlu0 %v79, 32
    %v106 = vpop.permute.xlu0 %105
    %107 = vrot.lane.b32.xlu0 %v80, 32
    %v108 = vpop.permute.xlu0 %107
    %vm113 = vcmask 261120
    %v114 = vsel %vm113, %v73, %v102
    %v115 = vsel %vm113, %v74, %v104
    %v116 = vsel %vm113, %v75, %v106
    %v117 = vsel %vm113, %v76, %v108
    %v118 = vpack.c.bf16 %v115, %v114
    %v119 = vpack.c.bf16 %v117, %v116
    %v120 = vld [vmem:[%s3] sm:$0xf]
    %v121 = vld [vmem:[%s3 + $0x4] sm:$0xf]
    %v122 = vld [vmem:[%s3 + $0x8] sm:$0xf]
    %v123 = vld [vmem:[%s3 + $0xc] sm:$0xf]
    %v124 = vld [vmem:[%s3 + $0x10] sm:$0xf]
    %v125 = vld [vmem:[%s3 + $0x14] sm:$0xf]
    %v126 = vld [vmem:[%s3 + $0x18] sm:$0xf]
    %v127 = vld [vmem:[%s3 + $0x1c] sm:$0xf]
    %v128 = vld [vmem:[%s4] sm:$0x1]
    %v129 = vlaneseq
    %v130 = vshrl.u32 %v129, 7
    %v131 = vsub.s32 0, %v130
    %v132 = vrot.slane %v128, %v131
    %v141 = vunpack.c.l.b16 %v120
    %v142 = vunpack.c.l.b16 %v121
    %v143 = vunpack.c.l.b16 %v122
    %v144 = vunpack.c.l.b16 %v123
    %v145 = vunpack.c.l.b16 %v124
    %v146 = vunpack.c.l.b16 %v125
    %v147 = vunpack.c.l.b16 %v126
    %v148 = vunpack.c.l.b16 %v127
    %v149 = vpack.c.b16 %v142, %v141
    %v150 = vpack.c.b16 %v144, %v143
    %v151 = vpack.c.b16 %v146, %v145
    %v152 = vpack.c.b16 %v148, %v147
    %vm157 = vcmask 523264
    %v159 = vsel %vm157, %v118, 0
    %v162 = vsel %vm157, %v119, 0
    %164 = vmatprep.subr.bf16.mxu0 0
    %165 = vmatpush1.bf16.msra.mxu0 %v149
    %166 = vmatprep.subr.bf16.mxu0 0
    %167 = vmatpush1.bf16.msra.mxu0 %v150
    %168 = vmatprep.subr.bf16.mxu0 0
    %169 = vmatpush1.bf16.msra.mxu0 %v151
    %170 = vmatprep.subr.bf16.mxu0 0
    %171 = vmatpush1.bf16.msra.mxu0 %v152
    %172 = vmatprep.subr.bf16.mxu0 0
    %173 = vmatpush1.bf16.msra.mxu0 0
    %174 = vmatprep.subr.bf16.mxu0 0
    %175 = vmatpush1.bf16.msra.mxu0 0
    %176 = vmatprep.subr.bf16.mxu0 0
    %177 = vmatpush1.bf16.msra.mxu0 0
    %178 = vmatprep.subr.bf16.mxu0 0
    %179 = vmatpush1.bf16.msra.mxu0 0
    %180 = vmatprep.subr.bf16.mxu0 0
    %181 = vmatpush1.bf16.msra.mxu0 0
    %182 = vmatprep.subr.bf16.mxu0 0
    %183 = vmatpush1.bf16.msra.mxu0 0
    %184 = vmatprep.subr.bf16.mxu0 0
    %185 = vmatpush1.bf16.msra.mxu0 0
    %186 = vmatprep.subr.bf16.mxu0 0
    %187 = vmatpush1.bf16.msra.mxu0 0
    %188 = vmatprep.subr.bf16.mxu0 0
    %189 = vmatpush1.bf16.msra.mxu0 0
    %190 = vmatprep.subr.bf16.mxu0 0
    %191 = vmatpush1.bf16.msra.mxu0 0
    %192 = vmatprep.subr.bf16.mxu0 0
    %193 = vmatpush1.bf16.msra.mxu0 0
    %194 = vmatprep.subr.bf16.mxu0 0
    %195 = vmatpush1.bf16.msra.mxu0 0
    %196 = vmatprep.mubr.bf16.mxu0 0
    %197 = vmatmul.mubr.bf16.gmra.mrb[0].mxu0 %v159
    %v198 = vpop.f32.mrb[0].mxu0
    %v199 = vadd.f32 %v132, %v198
    %v200 = vpop.f32.mrb[0].mxu0
    %v201 = vpop.f32.mrb[0].mxu0
    %v202 = vadd.f32 %v132, %v201
    %v203 = vpop.f32.mrb[0].mxu0
    %204 = vmatprep.mubr.bf16.mxu0 0
    %205 = vmatmul.mubr.bf16.gmra.mrb[0].mxu0 %v162
    %v206 = vpop.f32.mrb[0].mxu0
    %v207 = vadd.f32 %v132, %v206
    %v208 = vpop.f32.mrb[0].mxu0
    %v209 = vpop.f32.mrb[0].mxu0
    %v210 = vadd.f32 %v132, %v209
    %v211 = vpop.f32.mrb[0].mxu0
    %212 = vdwg.mxu0
    %229 = vrot.lane.b32.xlu0 %v25, 32
    %v230 = vpop.permute.xlu0 %229
    %231 = vrot.lane.b32.xlu0 %v26, 32
    %v232 = vpop.permute.xlu0 %231
    %233 = vrot.lane.b32.xlu0 %v27, 32
    %v234 = vpop.permute.xlu0 %233
    %235 = vrot.lane.b32.xlu0 %v28, 32
    %v236 = vpop.permute.xlu0 %235
    %237 = vrot.lane.b32.xlu0 %v29, 32
    %v238 = vpop.permute.xlu0 %237
    %239 = vrot.lane.b32.xlu0 %v30, 32
    %v240 = vpop.permute.xlu0 %239
    %241 = vrot.lane.b32.xlu0 %v31, 32
    %v242 = vpop.permute.xlu0 %241
    %243 = vrot.lane.b32.xlu0 %v32, 32
    %v244 = vpop.permute.xlu0 %243
    %245 = vrot.lane.b32.xlu0 %v33, 32
    %v246 = vpop.permute.xlu0 %245
    %247 = vrot.lane.b32.xlu0 %v34, 32
    %v248 = vpop.permute.xlu0 %247
    %249 = vrot.lane.b32.xlu0 %v35, 32
    %v250 = vpop.permute.xlu0 %249
    %251 = vrot.lane.b32.xlu0 %v36, 32
    %v252 = vpop.permute.xlu0 %251
    %253 = vrot.lane.b32.xlu0 %v37, 32
    %v254 = vpop.permute.xlu0 %253
    %255 = vrot.lane.b32.xlu0 %v38, 32
    %v256 = vpop.permute.xlu0 %255
    %257 = vrot.lane.b32.xlu0 %v39, 32
    %v258 = vpop.permute.xlu0 %257
    %259 = vrot.lane.b32.xlu0 %v40, 32
    %v260 = vpop.permute.xlu0 %259
    %v277 = vmul.f32 %v199, %v230
    %v278 = vmul.f32 %v202, %v232
    %v279 = vmul.f32 %v199, %v234
    %v280 = vmul.f32 %v202, %v236
    %v281 = vmul.f32 %v199, %v238
    %v282 = vmul.f32 %v202, %v240
    %v283 = vmul.f32 %v199, %v242
    %v284 = vmul.f32 %v202, %v244
    %v285 = vmul.f32 %v199, %v246
    %v286 = vmul.f32 %v202, %v248
    %v287 = vmul.f32 %v199, %v250
    %v288 = vmul.f32 %v202, %v252
    %v289 = vmul.f32 %v199, %v254
    %v290 = vmul.f32 %v202, %v256
    %v291 = vmul.f32 %v199, %v258
    %v292 = vmul.f32 %v202, %v260
    %v293 = vmul.f32 %v207, %v230
    %v294 = vmul.f32 %v210, %v232
    %v295 = vmul.f32 %v207, %v234
    %v296 = vmul.f32 %v210, %v236
    %v297 = vmul.f32 %v207, %v238
    %v298 = vmul.f32 %v210, %v240
    %v299 = vmul.f32 %v207, %v242
    %v300 = vmul.f32 %v210, %v244
    %v301 = vmul.f32 %v207, %v246
    %v302 = vmul.f32 %v210, %v248
    %v303 = vmul.f32 %v207, %v250
    %v304 = vmul.f32 %v210, %v252
    %v305 = vmul.f32 %v207, %v254
    %v306 = vmul.f32 %v210, %v256
    %v307 = vmul.f32 %v207, %v258
    %v308 = vmul.f32 %v210, %v260
    %v309 = vpack.c.bf16 %v278, %v277
    %v310 = vpack.c.bf16 %v280, %v279
    %v311 = vpack.c.bf16 %v282, %v281
    %v312 = vpack.c.bf16 %v284, %v283
    %v313 = vpack.c.bf16 %v286, %v285
    %v314 = vpack.c.bf16 %v288, %v287
    %v315 = vpack.c.bf16 %v290, %v289
    %v316 = vpack.c.bf16 %v292, %v291
    %v317 = vpack.c.bf16 %v294, %v293
    %v318 = vpack.c.bf16 %v296, %v295
    %v319 = vpack.c.bf16 %v298, %v297
    %v320 = vpack.c.bf16 %v300, %v299
    %v321 = vpack.c.bf16 %v302, %v301
    %v322 = vpack.c.bf16 %v304, %v303
    %v323 = vpack.c.bf16 %v306, %v305
    %v324 = vpack.c.bf16 %v308, %v307
    %325 = vrot.lane.b32.xlu0 %v25, 64
    %v326 = vpop.permute.xlu0 %325
    %327 = vrot.lane.b32.xlu0 %v26, 64
    %v328 = vpop.permute.xlu0 %327
    %329 = vrot.lane.b32.xlu0 %v27, 64
    %v330 = vpop.permute.xlu0 %329
    %331 = vrot.lane.b32.xlu0 %v28, 64
    %v332 = vpop.permute.xlu0 %331
    %333 = vrot.lane.b32.xlu0 %v29, 64
    %v334 = vpop.permute.xlu0 %333
    %335 = vrot.lane.b32.xlu0 %v30, 64
    %v336 = vpop.permute.xlu0 %335
    %337 = vrot.lane.b32.xlu0 %v31, 64
    %v338 = vpop.permute.xlu0 %337
    %339 = vrot.lane.b32.xlu0 %v32, 64
    %v340 = vpop.permute.xlu0 %339
    %341 = vrot.lane.b32.xlu0 %v33, 64
    %v342 = vpop.permute.xlu0 %341
    %343 = vrot.lane.b32.xlu0 %v34, 64
    %v344 = vpop.permute.xlu0 %343
    %345 = vrot.lane.b32.xlu0 %v35, 64
    %v346 = vpop.permute.xlu0 %345
    %347 = vrot.lane.b32.xlu0 %v36, 64
    %v348 = vpop.permute.xlu0 %347
    %349 = vrot.lane.b32.xlu0 %v37, 64
    %v350 = vpop.permute.xlu0 %349
    %351 = vrot.lane.b32.xlu0 %v38, 64
    %v352 = vpop.permute.xlu0 %351
    %353 = vrot.lane.b32.xlu0 %v39, 64
    %v354 = vpop.permute.xlu0 %353
    %355 = vrot.lane.b32.xlu0 %v40, 64
    %v356 = vpop.permute.xlu0 %355
    %v373 = vmul.f32 %v199, %v326
    %v374 = vmul.f32 %v202, %v328
    %v375 = vmul.f32 %v199, %v330
    %v376 = vmul.f32 %v202, %v332
    %v377 = vmul.f32 %v199, %v334
    %v378 = vmul.f32 %v202, %v336
    %v379 = vmul.f32 %v199, %v338
    %v380 = vmul.f32 %v202, %v340
    %v381 = vmul.f32 %v199, %v342
    %v382 = vmul.f32 %v202, %v344
    %v383 = vmul.f32 %v199, %v346
    %v384 = vmul.f32 %v202, %v348
    %v385 = vmul.f32 %v199, %v350
    %v386 = vmul.f32 %v202, %v352
    %v387 = vmul.f32 %v199, %v354
    %v388 = vmul.f32 %v202, %v356
    %v389 = vmul.f32 %v207, %v326
    %v390 = vmul.f32 %v210, %v328
    %v391 = vmul.f32 %v207, %v330
    %v392 = vmul.f32 %v210, %v332
    %v393 = vmul.f32 %v207, %v334
    %v394 = vmul.f32 %v210, %v336
    %v395 = vmul.f32 %v207, %v338
    %v396 = vmul.f32 %v210, %v340
    %v397 = vmul.f32 %v207, %v342
    %v398 = vmul.f32 %v210, %v344
    %v399 = vmul.f32 %v207, %v346
    %v400 = vmul.f32 %v210, %v348
    %v401 = vmul.f32 %v207, %v350
    %v402 = vmul.f32 %v210, %v352
    %v403 = vmul.f32 %v207, %v354
    %v404 = vmul.f32 %v210, %v356
    %v405 = vpack.c.bf16 %v374, %v373
    %v406 = vpack.c.bf16 %v376, %v375
    %v407 = vpack.c.bf16 %v378, %v377
    %v408 = vpack.c.bf16 %v380, %v379
    %v409 = vpack.c.bf16 %v382, %v381
    %v410 = vpack.c.bf16 %v384, %v383
    %v411 = vpack.c.bf16 %v386, %v385
    %v412 = vpack.c.bf16 %v388, %v387
    %v413 = vpack.c.bf16 %v390, %v389
    %v414 = vpack.c.bf16 %v392, %v391
    %v415 = vpack.c.bf16 %v394, %v393
    %v416 = vpack.c.bf16 %v396, %v395
    %v417 = vpack.c.bf16 %v398, %v397
    %v418 = vpack.c.bf16 %v400, %v399
    %v419 = vpack.c.bf16 %v402, %v401
    %v420 = vpack.c.bf16 %v404, %v403
    %v421 = vpack.c.bf16 %v202, %v199
    %v422 = vpack.c.bf16 %v210, %v207
    %431 = vrot.lane.b32.xlu0 %v309, 96
    %v432 = vpop.permute.xlu0 %431
    %433 = vrot.lane.b32.xlu0 %v310, 96
    %v434 = vpop.permute.xlu0 %433
    %435 = vrot.lane.b32.xlu0 %v311, 96
    %v436 = vpop.permute.xlu0 %435
    %437 = vrot.lane.b32.xlu0 %v312, 96
    %v438 = vpop.permute.xlu0 %437
    %439 = vrot.lane.b32.xlu0 %v313, 96
    %v440 = vpop.permute.xlu0 %439
    %441 = vrot.lane.b32.xlu0 %v314, 96
    %v442 = vpop.permute.xlu0 %441
    %443 = vrot.lane.b32.xlu0 %v315, 96
    %v444 = vpop.permute.xlu0 %443
    %445 = vrot.lane.b32.xlu0 %v316, 96
    %v446 = vpop.permute.xlu0 %445
    %v448 = vsel %vm113, %v421, 0
    %v451 = vsel %vm113, %v432, 0
    %v454 = vsel %vm113, %v434, 0
    %v457 = vsel %vm113, %v436, 0
    %v460 = vsel %vm113, %v438, 0
    %v463 = vsel %vm113, %v440, 0
    %v466 = vsel %vm113, %v442, 0
    %v469 = vsel %vm113, %v444, 0
    %v472 = vsel %vm113, %v446, 0
    %474 = vmatprep.subr.bf16.mxu0 0
    %475 = vmatpush1.bf16.xpose.msra.mxu0 %v451
    %476 = vmatprep.subr.bf16.mxu0 0
    %477 = vmatpush1.bf16.xpose.msra.mxu0 %v454
    %478 = vmatprep.subr.bf16.mxu0 0
    %479 = vmatpush1.bf16.xpose.msra.mxu0 %v457
    %480 = vmatprep.subr.bf16.mxu0 0
    %481 = vmatpush1.bf16.xpose.msra.mxu0 %v460
    %482 = vmatprep.subr.bf16.mxu0 0
    %483 = vmatpush1.bf16.xpose.msra.mxu0 %v463
    %484 = vmatprep.subr.bf16.mxu0 0
    %485 = vmatpush1.bf16.xpose.msra.mxu0 %v466
    %486 = vmatprep.subr.bf16.mxu0 0
    %487 = vmatpush1.bf16.xpose.msra.mxu0 %v469
    %488 = vmatprep.subr.bf16.mxu0 0
    %489 = vmatpush1.bf16.xpose.msra.mxu0 %v472
    %490 = vmatprep.subr.bf16.mxu0 0
    %491 = vmatpush1.bf16.xpose.msra.mxu0 0
    %492 = vmatprep.subr.bf16.mxu0 0
    %493 = vmatpush1.bf16.xpose.msra.mxu0 0
    %494 = vmatprep.subr.bf16.mxu0 0
    %495 = vmatpush1.bf16.xpose.msra.mxu0 0
    %496 = vmatprep.subr.bf16.mxu0 0
    %497 = vmatpush1.bf16.xpose.msra.mxu0 0
    %498 = vmatprep.subr.bf16.mxu0 0
    %499 = vmatpush1.bf16.xpose.msra.mxu0 0
    %500 = vmatprep.subr.bf16.mxu0 0
    %501 = vmatpush1.bf16.xpose.msra.mxu0 0
    %502 = vmatprep.subr.bf16.mxu0 0
    %503 = vmatpush1.bf16.xpose.msra.mxu0 0
    %504 = vmatprep.subr.bf16.mxu0 0
    %505 = vmatpush1.bf16.xpose.msra.mxu0 0
    %506 = vmatprep.mubr.bf16.mxu0 0
    %507 = vmatmul.mubr.bf16.gmra.mrb[0].mxu0 %v448
    %v508 = vpop.f32.mrb[0].mxu0
    %v509 = vadd.f32 0.0, %v508
    %v510 = vpop.f32.mrb[0].mxu0
    %v511 = vpop.f32.mrb[0].mxu0
    %v512 = vadd.f32 0.0, %v511
    %v513 = vpop.f32.mrb[0].mxu0
    %514 = vdwg.mxu0
    %523 = vrot.lane.b32.xlu0 %v317, 96
    %v524 = vpop.permute.xlu0 %523
    %525 = vrot.lane.b32.xlu0 %v318, 96
    %v526 = vpop.permute.xlu0 %525
    %527 = vrot.lane.b32.xlu0 %v319, 96
    %v528 = vpop.permute.xlu0 %527
    %529 = vrot.lane.b32.xlu0 %v320, 96
    %v530 = vpop.permute.xlu0 %529
    %531 = vrot.lane.b32.xlu0 %v321, 96
    %v532 = vpop.permute.xlu0 %531
    %533 = vrot.lane.b32.xlu0 %v322, 96
    %v534 = vpop.permute.xlu0 %533
    %535 = vrot.lane.b32.xlu0 %v323, 96
    %v536 = vpop.permute.xlu0 %535
    %537 = vrot.lane.b32.xlu0 %v324, 96
    %v538 = vpop.permute.xlu0 %537
    %v540 = vsel %vm113, %v422, 0
    %v543 = vsel %vm113, %v524, 0
    %v546 = vsel %vm113, %v526, 0
    %v549 = vsel %vm113, %v528, 0
    %v552 = vsel %vm113, %v530, 0
    %v555 = vsel %vm113, %v532, 0
    %v558 = vsel %vm113, %v534, 0
    %v561 = vsel %vm113, %v536, 0
    %v564 = vsel %vm113, %v538, 0
    %566 = vmatprep.subr.bf16.mxu0 0
    %567 = vmatpush1.bf16.xpose.msra.mxu0 %v543
    %568 = vmatprep.subr.bf16.mxu0 0
    %569 = vmatpush1.bf16.xpose.msra.mxu0 %v546
    %570 = vmatprep.subr.bf16.mxu0 0
    %571 = vmatpush1.bf16.xpose.msra.mxu0 %v549
    %572 = vmatprep.subr.bf16.mxu0 0
    %573 = vmatpush1.bf16.xpose.msra.mxu0 %v552
    %574 = vmatprep.subr.bf16.mxu0 0
    %575 = vmatpush1.bf16.xpose.msra.mxu0 %v555
    %576 = vmatprep.subr.bf16.mxu0 0
    %577 = vmatpush1.bf16.xpose.msra.mxu0 %v558
    %578 = vmatprep.subr.bf16.mxu0 0
    %579 = vmatpush1.bf16.xpose.msra.mxu0 %v561
    %580 = vmatprep.subr.bf16.mxu0 0
    %581 = vmatpush1.bf16.xpose.msra.mxu0 %v564
    %582 = vmatprep.subr.bf16.mxu0 0
    %583 = vmatpush1.bf16.xpose.msra.mxu0 0
    %584 = vmatprep.subr.bf16.mxu0 0
    %585 = vmatpush1.bf16.xpose.msra.mxu0 0
    %586 = vmatprep.subr.bf16.mxu0 0
    %587 = vmatpush1.bf16.xpose.msra.mxu0 0
    %588 = vmatprep.subr.bf16.mxu0 0
    %589 = vmatpush1.bf16.xpose.msra.mxu0 0
    %590 = vmatprep.subr.bf16.mxu0 0
    %591 = vmatpush1.bf16.xpose.msra.mxu0 0
    %592 = vmatprep.subr.bf16.mxu0 0
    %593 = vmatpush1.bf16.xpose.msra.mxu0 0
    %594 = vmatprep.subr.bf16.mxu0 0
    %595 = vmatpush1.bf16.xpose.msra.mxu0 0
    %596 = vmatprep.subr.bf16.mxu0 0
    %597 = vmatpush1.bf16.xpose.msra.mxu0 0
    %598 = vmatprep.mubr.bf16.mxu0 0
    %599 = vmatmul.mubr.bf16.gmra.mrb[0].mxu0 %v540
    %v600 = vpop.f32.mrb[0].mxu0
    %v601 = vadd.f32 0.0, %v600
    %v602 = vpop.f32.mrb[0].mxu0
    %v603 = vpop.f32.mrb[0].mxu0
    %v604 = vadd.f32 0.0, %v603
    %v605 = vpop.f32.mrb[0].mxu0
    %606 = vdwg.mxu0
    %607 = vmax.xlane.f32.xlu0 %v509
    %v608 = vpop.xlane.xlu0 %607
    %609 = vmax.xlane.f32.xlu0 %v512
    %v610 = vpop.xlane.xlu0 %609
    %611 = vmax.xlane.f32.xlu0 %v601
    %v612 = vpop.xlane.xlu0 %611
    %613 = vmax.xlane.f32.xlu0 %v604
    %v614 = vpop.xlane.xlu0 %613
    %v615 = vsub.f32 %v509, %v608
    %v616 = vsub.f32 %v512, %v610
    %v617 = vsub.f32 %v601, %v612
    %v618 = vsub.f32 %v604, %v614
    %v619 = vmul.f32 %v615, 1.442695
    %v620 = vpow.pop %v619
    %v621 = vmul.f32 %v616, 1.442695
    %v622 = vpow.pop %v621
    %v623 = vmul.f32 %v617, 1.442695
    %v624 = vpow.pop %v623
    %v625 = vmul.f32 %v618, 1.442695
    %v626 = vpow.pop %v625
    %v627 = vpack.c.bf16 %v622, %v620
    %v628 = vpack.c.bf16 %v626, %v624
    %637 = vrot.lane.b32.xlu0 %v405, 64
    %v638 = vpop.permute.xlu0 %637
    %639 = vrot.lane.b32.xlu0 %v406, 64
    %v640 = vpop.permute.xlu0 %639
    %641 = vrot.lane.b32.xlu0 %v407, 64
    %v642 = vpop.permute.xlu0 %641
    %643 = vrot.lane.b32.xlu0 %v408, 64
    %v644 = vpop.permute.xlu0 %643
    %645 = vrot.lane.b32.xlu0 %v409, 64
    %v646 = vpop.permute.xlu0 %645
    %647 = vrot.lane.b32.xlu0 %v410, 64
    %v648 = vpop.permute.xlu0 %647
    %649 = vrot.lane.b32.xlu0 %v411, 64
    %v650 = vpop.permute.xlu0 %649
    %651 = vrot.lane.b32.xlu0 %v412, 64
    %v652 = vpop.permute.xlu0 %651
    %661 = vmatprep.subr.bf16.mxu0 0
    %662 = vmatpush1.bf16.msra.mxu0 %v638
    %663 = vmatprep.subr.bf16.mxu0 0
    %664 = vmatpush1.bf16.msra.mxu0 %v640
    %665 = vmatprep.subr.bf16.mxu0 0
    %666 = vmatpush1.bf16.msra.mxu0 %v642
    %667 = vmatprep.subr.bf16.mxu0 0
    %668 = vmatpush1.bf16.msra.mxu0 %v644
    %669 = vmatprep.subr.bf16.mxu0 0
    %670 = vmatpush1.bf16.msra.mxu0 %v646
    %671 = vmatprep.subr.bf16.mxu0 0
    %672 = vmatpush1.bf16.msra.mxu0 %v648
    %673 = vmatprep.subr.bf16.mxu0 0
    %674 = vmatpush1.bf16.msra.mxu0 %v650
    %675 = vmatprep.subr.bf16.mxu0 0
    %676 = vmatpush1.bf16.msra.mxu0 %v652
    %677 = vmatprep.subr.bf16.mxu0 0
    %678 = vmatpush1.bf16.msra.mxu0 0
    %679 = vmatprep.subr.bf16.mxu0 0
    %680 = vmatpush1.bf16.msra.mxu0 0
    %681 = vmatprep.subr.bf16.mxu0 0
    %682 = vmatpush1.bf16.msra.mxu0 0
    %683 = vmatprep.subr.bf16.mxu0 0
    %684 = vmatpush1.bf16.msra.mxu0 0
    %685 = vmatprep.subr.bf16.mxu0 0
    %686 = vmatpush1.bf16.msra.mxu0 0
    %687 = vmatprep.subr.bf16.mxu0 0
    %688 = vmatpush1.bf16.msra.mxu0 0
    %689 = vmatprep.subr.bf16.mxu0 0
    %690 = vmatpush1.bf16.msra.mxu0 0
    %691 = vmatprep.subr.bf16.mxu0 0
    %692 = vmatpush1.bf16.msra.mxu0 0
    %693 = vmatprep.mubr.bf16.mxu0 0
    %694 = vmatmul.mubr.bf16.gmra.mrb[0].mxu0 %v627
    %v695 = vpop.f32.mrb[0].mxu0
    %v696 = vadd.f32 0.0, %v695
    %v697 = vpop.f32.mrb[0].mxu0
    %v698 = vpop.f32.mrb[0].mxu0
    %v699 = vadd.f32 0.0, %v698
    %v700 = vpop.f32.mrb[0].mxu0
    %701 = vdwg.mxu0
    %710 = vrot.lane.b32.xlu0 %v413, 64
    %v711 = vpop.permute.xlu0 %710
    %712 = vrot.lane.b32.xlu0 %v414, 64
    %v713 = vpop.permute.xlu0 %712
    %714 = vrot.lane.b32.xlu0 %v415, 64
    %v715 = vpop.permute.xlu0 %714
    %716 = vrot.lane.b32.xlu0 %v416, 64
    %v717 = vpop.permute.xlu0 %716
    %718 = vrot.lane.b32.xlu0 %v417, 64
    %v719 = vpop.permute.xlu0 %718
    %720 = vrot.lane.b32.xlu0 %v418, 64
    %v721 = vpop.permute.xlu0 %720
    %722 = vrot.lane.b32.xlu0 %v419, 64
    %v723 = vpop.permute.xlu0 %722
    %724 = vrot.lane.b32.xlu0 %v420, 64
    %v725 = vpop.permute.xlu0 %724
    %734 = vmatprep.subr.bf16.mxu0 0
    %735 = vmatpush1.bf16.msra.mxu0 %v711
    %736 = vmatprep.subr.bf16.mxu0 0
    %737 = vmatpush1.bf16.msra.mxu0 %v713
    %738 = vmatprep.subr.bf16.mxu0 0
    %739 = vmatpush1.bf16.msra.mxu0 %v715
    %740 = vmatprep.subr.bf16.mxu0 0
    %741 = vmatpush1.bf16.msra.mxu0 %v717
    %742 = vmatprep.subr.bf16.mxu0 0
    %743 = vmatpush1.bf16.msra.mxu0 %v719
    %744 = vmatprep.subr.bf16.mxu0 0
    %745 = vmatpush1.bf16.msra.mxu0 %v721
    %746 = vmatprep.subr.bf16.mxu0 0
    %747 = vmatpush1.bf16.msra.mxu0 %v723
    %748 = vmatprep.subr.bf16.mxu0 0
    %749 = vmatpush1.bf16.msra.mxu0 %v725
    %750 = vmatprep.subr.bf16.mxu0 0
    %751 = vmatpush1.bf16.msra.mxu0 0
    %752 = vmatprep.subr.bf16.mxu0 0
    %753 = vmatpush1.bf16.msra.mxu0 0
    %754 = vmatprep.subr.bf16.mxu0 0
    %755 = vmatpush1.bf16.msra.mxu0 0
    %756 = vmatprep.subr.bf16.mxu0 0
    %757 = vmatpush1.bf16.msra.mxu0 0
    %758 = vmatprep.subr.bf16.mxu0 0
    %759 = vmatpush1.bf16.msra.mxu0 0
    %760 = vmatprep.subr.bf16.mxu0 0
    %761 = vmatpush1.bf16.msra.mxu0 0
    %762 = vmatprep.subr.bf16.mxu0 0
    %763 = vmatpush1.bf16.msra.mxu0 0
    %764 = vmatprep.subr.bf16.mxu0 0
    %765 = vmatpush1.bf16.msra.mxu0 0
    %766 = vmatprep.mubr.bf16.mxu0 0
    %767 = vmatmul.mubr.bf16.gmra.mrb[0].mxu0 %v628
    %v768 = vpop.f32.mrb[0].mxu0
    %v769 = vadd.f32 0.0, %v768
    %v770 = vpop.f32.mrb[0].mxu0
    %v771 = vpop.f32.mrb[0].mxu0
    %v772 = vadd.f32 0.0, %v771
    %v773 = vpop.f32.mrb[0].mxu0
    %774 = vdwg.mxu0
    %775 = vmatprep.subr.mxu0 0.0
    %776 = vmatpush1.msra.mxu0 %v25
    %777 = vmatprep.subr.mxu0 0.0
    %778 = vmatpush1.msra.mxu0 %v26
    %779 = vmatprep.subr.mxu0 0.0
    %780 = vmatpush1.msra.mxu0 %v27
    %781 = vmatprep.subr.mxu0 0.0
    %782 = vmatpush1.msra.mxu0 %v28
    %783 = vmatprep.subr.mxu0 0.0
    %784 = vmatpush1.msra.mxu0 %v29
    %785 = vmatprep.subr.mxu0 0.0
    %786 = vmatpush1.msra.mxu0 %v30
    %787 = vmatprep.subr.mxu0 0.0
    %788 = vmatpush1.msra.mxu0 %v31
    %789 = vmatprep.subr.mxu0 0.0
    %790 = vmatpush1.msra.mxu0 %v32
    %791 = vmatprep.subr.mxu0 0.0
    %792 = vmatpush1.msra.mxu0 %v33
    %793 = vmatprep.subr.mxu0 0.0
    %794 = vmatpush1.msra.mxu0 %v34
    %795 = vmatprep.subr.mxu0 0.0
    %796 = vmatpush1.msra.mxu0 %v35
    %797 = vmatprep.subr.mxu0 0.0
    %798 = vmatpush1.msra.mxu0 %v36
    %799 = vmatprep.subr.mxu0 0.0
    %800 = vmatpush1.msra.mxu0 %v37
    %801 = vmatprep.subr.mxu0 0.0
    %802 = vmatpush1.msra.mxu0 %v38
    %803 = vmatprep.subr.mxu0 0.0
    %804 = vmatpush1.msra.mxu0 %v39
    %805 = vmatprep.subr.mxu0 0.0
    %806 = vmatpush1.msra.mxu0 %v40
    %807 = vmatprep.subr.mxu0 0.0
    %808 = vmatpush1.msra.mxu0 0.0
    %809 = vmatprep.subr.mxu0 0.0
    %810 = vmatpush1.msra.mxu0 0.0
    %811 = vmatprep.subr.mxu0 0.0
    %812 = vmatpush1.msra.mxu0 0.0
    %813 = vmatprep.subr.mxu0 0.0
    %814 = vmatpush1.msra.mxu0 0.0
    %815 = vmatprep.subr.mxu0 0.0
    %816 = vmatpush1.msra.mxu0 0.0
    %817 = vmatprep.subr.mxu0 0.0
    %818 = vmatpush1.msra.mxu0 0.0
    %819 = vmatprep.subr.mxu0 0.0
    %820 = vmatpush1.msra.mxu0 0.0
    %821 = vmatprep.subr.mxu0 0.0
    %822 = vmatpush1.msra.mxu0 0.0
    %823 = vmatprep.subr.mxu0 0.0
    %824 = vmatpush1.msra.mxu0 0.0
    %825 = vmatprep.subr.mxu0 0.0
    %826 = vmatpush1.msra.mxu0 0.0
    %827 = vmatprep.subr.mxu0 0.0
    %828 = vmatpush1.msra.mxu0 0.0
    %829 = vmatprep.subr.mxu0 0.0
    %830 = vmatpush1.msra.mxu0 0.0
    %831 = vmatprep.subr.mxu0 0.0
    %832 = vmatpush1.msra.mxu0 0.0
    %833 = vmatprep.subr.mxu0 0.0
    %834 = vmatpush1.msra.mxu0 0.0
    %835 = vmatprep.subr.mxu0 0.0
    %836 = vmatpush1.msra.mxu0 0.0
    %837 = vmatprep.subr.mxu0 0.0
    %838 = vmatpush1.msra.mxu0 0.0
    %839 = vmatprep.mubr.f32.mxu0 0.0
    %840 = vmatmul.mubr.f32.gmra.mrb[0].mxu0 %v620
    %v841 = vpop.f32.mrb[0].mxu0
    %v842 = vadd.f32 0.0, %v841
    %v843 = vpop.f32.mrb[0].mxu0
    %844 = vmatprep.mubr.f32.mxu0 0.0
    %845 = vmatmul.mubr.f32.gmra.mrb[0].mxu0 %v622
    %v846 = vpop.f32.mrb[0].mxu0
    %v847 = vadd.f32 0.0, %v846
    %v848 = vpop.f32.mrb[0].mxu0
    %849 = vmatprep.mubr.f32.mxu0 0.0
    %850 = vmatmul.mubr.f32.gmra.mrb[0].mxu0 %v624
    %v851 = vpop.f32.mrb[0].mxu0
    %v852 = vadd.f32 0.0, %v851
    %v853 = vpop.f32.mrb[0].mxu0
    %854 = vmatprep.mubr.f32.mxu0 0.0
    %855 = vmatmul.mubr.f32.gmra.mrb[0].mxu0 %v626
    %v856 = vpop.f32.mrb[0].mxu0
    %v857 = vadd.f32 0.0, %v856
    %v858 = vpop.f32.mrb[0].mxu0
    %859 = vdwg.mxu0
    %v860 = vmax.f32 %v842, 1e-20
    %v861 = vmax.f32 %v847, 1e-20
    %v862 = vmax.f32 %v852, 1e-20
    %v863 = vmax.f32 %v857, 1e-20
    %v864 = vrcp.pop %v860
    %v865 = vrcp.pop %v861
    %v866 = vrcp.pop %v862
    %v867 = vrcp.pop %v863
    %v868 = vmul.f32 %v696, %v864
    %v869 = vmul.f32 %v699, %v865
    %v870 = vmul.f32 %v769, %v866
    %v871 = vmul.f32 %v772, %v867
    %v872 = vpack.c.bf16 %v869, %v868
    %v873 = vpack.c.bf16 %v871, %v870
    %s874 = scalar_lea.vmem %s3, 32
    %v875 = vld [vmem:[%s874] sm:$0xf]
    %v876 = vld [vmem:[%s874 + $0x4] sm:$0xf]
    %v877 = vld [vmem:[%s874 + $0x8] sm:$0xf]
    %v878 = vld [vmem:[%s874 + $0xc] sm:$0xf]
    %v879 = vld [vmem:[%s4 + $0x1] sm:$0x1]
    %v880 = vlaneseq
    %v881 = vshrl.u32 %v880, 7
    %v882 = vsub.s32 0, %v881
    %v883 = vrot.slane %v879, %v882
    %v888 = vunpack.c.l.b16 %v875
    %v889 = vunpack.c.l.b16 %v876
    %v890 = vunpack.c.l.b16 %v877
    %v891 = vunpack.c.l.b16 %v878
    %v892 = vpack.c.b16 %v889, %v888
    %v893 = vpack.c.b16 %v891, %v890
    %v897 = vsel %vm113, %v872, 0
    %v900 = vsel %vm113, %v873, 0
    %902 = vmatprep.subr.bf16.mxu0 0
    %903 = vmatpush1.bf16.msra.mxu0 %v892
    %904 = vmatprep.subr.bf16.mxu0 0
    %905 = vmatpush1.bf16.msra.mxu0 %v893
    %906 = vmatprep.subr.bf16.mxu0 0
    %907 = vmatpush1.bf16.msra.mxu0 0
    %908 = vmatprep.subr.bf16.mxu0 0
    %909 = vmatpush1.bf16.msra.mxu0 0
    %910 = vmatprep.subr.bf16.mxu0 0
    %911 = vmatpush1.bf16.msra.mxu0 0
    %912 = vmatprep.subr.bf16.mxu0 0
    %913 = vmatpush1.bf16.msra.mxu0 0
    %914 = vmatprep.subr.bf16.mxu0 0
    %915 = vmatpush1.bf16.msra.mxu0 0
    %916 = vmatprep.subr.bf16.mxu0 0
    %917 = vmatpush1.bf16.msra.mxu0 0
    %918 = vmatprep.subr.bf16.mxu0 0
    %919 = vmatpush1.bf16.msra.mxu0 0
    %920 = vmatprep.subr.bf16.mxu0 0
    %921 = vmatpush1.bf16.msra.mxu0 0
    %922 = vmatprep.subr.bf16.mxu0 0
    %923 = vmatpush1.bf16.msra.mxu0 0
    %924 = vmatprep.subr.bf16.mxu0 0
    %925 = vmatpush1.bf16.msra.mxu0 0
    %926 = vmatprep.subr.bf16.mxu0 0
    %927 = vmatpush1.bf16.msra.mxu0 0
    %928 = vmatprep.subr.bf16.mxu0 0
    %929 = vmatpush1.bf16.msra.mxu0 0
    %930 = vmatprep.subr.bf16.mxu0 0
    %931 = vmatpush1.bf16.msra.mxu0 0
    %932 = vmatprep.subr.bf16.mxu0 0
    %933 = vmatpush1.bf16.msra.mxu0 0
    %934 = vmatprep.mubr.bf16.mxu0 0
    %935 = vmatmul.mubr.bf16.gmra.mrb[0].mxu0 %v897
    %v936 = vpop.f32.mrb[0].mxu0
    %v937 = vadd.f32 %v883, %v936
    %v938 = vpop.f32.mrb[0].mxu0
    %v939 = vpop.f32.mrb[0].mxu0
    %v940 = vadd.f32 %v883, %v939
    %v941 = vpop.f32.mrb[0].mxu0
    %942 = vmatprep.mubr.bf16.mxu0 0
    %943 = vmatmul.mubr.bf16.gmra.mrb[0].mxu0 %v900
    %v944 = vpop.f32.mrb[0].mxu0
    %v945 = vadd.f32 %v883, %v944
    %v946 = vpop.f32.mrb[0].mxu0
    %v947 = vpop.f32.mrb[0].mxu0
    %v948 = vadd.f32 %v883, %v947
    %v949 = vpop.f32.mrb[0].mxu0
    %950 = vdwg.mxu0
    %v951 = vadd.f32 %v73, %v937
    %v952 = vadd.f32 %v74, %v940
    %v953 = vadd.f32 %v75, %v945
    %v954 = vadd.f32 %v76, %v948
    %v955 = vld [vmem:[%s4 + $0x7] sm:$0x1]
    %v956 = vld [vmem:[%s4 + $0x8] sm:$0x1]
    %v957 = vsel %vm113, %v951, 0.0
    %958 = vadd.xlane.f32.xlu0 %v957
    %v959 = vpop.xlane.xlu0 %958
    %v960 = vsel %vm113, %v952, 0.0
    %961 = vadd.xlane.f32.xlu0 %v960
    %v962 = vpop.xlane.xlu0 %961
    %v963 = vsel %vm113, %v953, 0.0
    %964 = vadd.xlane.f32.xlu0 %v963
    %v965 = vpop.xlane.xlu0 %964
    %v966 = vsel %vm113, %v954, 0.0
    %967 = vadd.xlane.f32.xlu0 %v966
    %v968 = vpop.xlane.xlu0 %967
    %v969 = vrcp.pop 32.0
    %v970 = vmul.f32 %v959, %v969
    %v971 = vmul.f32 %v962, %v969
    %v972 = vmul.f32 %v965, %v969
    %v973 = vmul.f32 %v968, %v969
    %v974 = vsub.f32 %v951, %v970
    %v975 = vsub.f32 %v952, %v971
    %v976 = vsub.f32 %v953, %v972
    %v977 = vsub.f32 %v954, %v973
    %v978 = vmul.f32 %v974, %v974
    %v979 = vmul.f32 %v975, %v975
    %v980 = vmul.f32 %v976, %v976
    %v981 = vmul.f32 %v977, %v977
    %v982 = vsel %vm113, %v978, 0.0
    %983 = vadd.xlane.f32.xlu0 %v982
    %v984 = vpop.xlane.xlu0 %983
    %v985 = vsel %vm113, %v979, 0.0
    %986 = vadd.xlane.f32.xlu0 %v985
    %v987 = vpop.xlane.xlu0 %986
    %v988 = vsel %vm113, %v980, 0.0
    %989 = vadd.xlane.f32.xlu0 %v988
    %v990 = vpop.xlane.xlu0 %989
    %v991 = vsel %vm113, %v981, 0.0
    %992 = vadd.xlane.f32.xlu0 %v991
    %v993 = vpop.xlane.xlu0 %992
    %v994 = vmul.f32 %v984, %v969
    %v995 = vmul.f32 %v987, %v969
    %v996 = vmul.f32 %v990, %v969
    %v997 = vmul.f32 %v993, %v969
    %v998 = vadd.f32 %v994, 1e-05
    %v999 = vadd.f32 %v995, 1e-05
    %v1000 = vadd.f32 %v996, 1e-05
    %v1001 = vadd.f32 %v997, 1e-05
    %v1002 = vrsqrt.pop %v998
    %v1003 = vrsqrt.pop %v999
    %v1004 = vrsqrt.pop %v1000
    %v1005 = vrsqrt.pop %v1001
    %v1006 = vmul.f32 %v974, %v1002
    %v1007 = vmul.f32 %v975, %v1003
    %v1008 = vmul.f32 %v976, %v1004
    %v1009 = vmul.f32 %v977, %v1005
    %v1010 = vlaneseq
    %v1011 = vshrl.u32 %v1010, 7
    %v1012 = vsub.s32 0, %v1011
    %v1013 = vrot.slane %v955, %v1012
    %v1014 = vmul.f32 %v1006, %v1013
    %v1015 = vmul.f32 %v1007, %v1013
    %v1016 = vmul.f32 %v1008, %v1013
    %v1017 = vmul.f32 %v1009, %v1013
    %v1018 = vlaneseq
    %v1019 = vshrl.u32 %v1018, 7
    %v1020 = vsub.s32 0, %v1019
    %v1021 = vrot.slane %v956, %v1020
    %v1022 = vadd.f32 %v1014, %v1021
    %v1023 = vadd.f32 %v1015, %v1021
    %v1024 = vadd.f32 %v1016, %v1021
    %v1025 = vadd.f32 %v1017, %v1021
    %v1026 = vadd.f32 %v1022, %v77
    %v1027 = vadd.f32 %v1023, %v78
    %v1028 = vadd.f32 %v1024, %v79
    %v1029 = vadd.f32 %v1025, %v80
    %v1030 = vpack.c.bf16 %v1027, %v1026
    %v1031 = vpack.c.bf16 %v1029, %v1028
    %s1032 = scalar_lea.vmem %s3, 64
    %v1033 = vld [vmem:[%s1032] sm:$0xf]
    %v1034 = vld [vmem:[%s1032 + $0x4] sm:$0xf]
    %v1035 = vld [vmem:[%s1032 + $0x8] sm:$0xf]
    %v1036 = vld [vmem:[%s1032 + $0xc] sm:$0xf]
    %v1037 = vld [vmem:[%s4 + $0x2] sm:$0x1]
    %v1038 = vlaneseq
    %v1039 = vshrl.u32 %v1038, 7
    %v1040 = vsub.s32 0, %v1039
    %v1041 = vrot.slane %v1037, %v1040
    %v1046 = vunpack.c.l.b16 %v1033
    %v1047 = vunpack.c.l.b16 %v1034
    %v1048 = vunpack.c.l.b16 %v1035
    %v1049 = vunpack.c.l.b16 %v1036
    %v1050 = vpack.c.b16 %v1047, %v1046
    %v1051 = vpack.c.b16 %v1049, %v1048
    %v1055 = vsel %vm113, %v1030, 0
    %v1058 = vsel %vm113, %v1031, 0
    %1060 = vmatprep.subr.bf16.mxu0 0
    %1061 = vmatpush1.bf16.msra.mxu0 %v1050
    %1062 = vmatprep.subr.bf16.mxu0 0
    %1063 = vmatpush1.bf16.msra.mxu0 %v1051
    %1064 = vmatprep.subr.bf16.mxu0 0
    %1065 = vmatpush1.bf16.msra.mxu0 0
    %1066 = vmatprep.subr.bf16.mxu0 0
    %1067 = vmatpush1.bf16.msra.mxu0 0
    %1068 = vmatprep.subr.bf16.mxu0 0
    %1069 = vmatpush1.bf16.msra.mxu0 0
    %1070 = vmatprep.subr.bf16.mxu0 0
    %1071 = vmatpush1.bf16.msra.mxu0 0
    %1072 = vmatprep.subr.bf16.mxu0 0
    %1073 = vmatpush1.bf16.msra.mxu0 0
    %1074 = vmatprep.subr.bf16.mxu0 0
    %1075 = vmatpush1.bf16.msra.mxu0 0
    %1076 = vmatprep.subr.bf16.mxu0 0
    %1077 = vmatpush1.bf16.msra.mxu0 0
    %1078 = vmatprep.subr.bf16.mxu0 0
    %1079 = vmatpush1.bf16.msra.mxu0 0
    %1080 = vmatprep.subr.bf16.mxu0 0
    %1081 = vmatpush1.bf16.msra.mxu0 0
    %1082 = vmatprep.subr.bf16.mxu0 0
    %1083 = vmatpush1.bf16.msra.mxu0 0
    %1084 = vmatprep.subr.bf16.mxu0 0
    %1085 = vmatpush1.bf16.msra.mxu0 0
    %1086 = vmatprep.subr.bf16.mxu0 0
    %1087 = vmatpush1.bf16.msra.mxu0 0
    %1088 = vmatprep.subr.bf16.mxu0 0
    %1089 = vmatpush1.bf16.msra.mxu0 0
    %1090 = vmatprep.subr.bf16.mxu0 0
    %1091 = vmatpush1.bf16.msra.mxu0 0
    %1092 = vmatprep.mubr.bf16.mxu0 0
    %1093 = vmatmul.mubr.bf16.gmra.mrb[0].mxu0 %v1055
    %v1094 = vpop.f32.mrb[0].mxu0
    %v1095 = vadd.f32 %v1041, %v1094
    %v1096 = vpop.f32.mrb[0].mxu0
    %v1097 = vpop.f32.mrb[0].mxu0
    %v1098 = vadd.f32 %v1041, %v1097
    %v1099 = vpop.f32.mrb[0].mxu0
    %1100 = vmatprep.mubr.bf16.mxu0 0
    %1101 = vmatmul.mubr.bf16.gmra.mrb[0].mxu0 %v1058
    %v1102 = vpop.f32.mrb[0].mxu0
    %v1103 = vadd.f32 %v1041, %v1102
    %v1104 = vpop.f32.mrb[0].mxu0
    %v1105 = vpop.f32.mrb[0].mxu0
    %v1106 = vadd.f32 %v1041, %v1105
    %v1107 = vpop.f32.mrb[0].mxu0
    %1108 = vdwg.mxu0
    %v1109 = vpack.c.bf16 %v82, %v81
    %v1110 = vpack.c.bf16 %v84, %v83
    %v1111 = vpack.c.bf16 %v86, %v85
    %v1112 = vpack.c.bf16 %v88, %v87
    %v1113 = vpack.c.bf16 %v90, %v89
    %v1114 = vpack.c.bf16 %v92, %v91
    %v1115 = vpack.c.bf16 %v94, %v93
    %v1116 = vpack.c.bf16 %v96, %v95
    %s1117 = scalar_lea.vmem %s3, 96
    %v1118 = vld [vmem:[%s1117] sm:$0xf]
    %v1119 = vld [vmem:[%s1117 + $0x4] sm:$0xf]
    %v1120 = vld [vmem:[%s1117 + $0x8] sm:$0xf]
    %v1121 = vld [vmem:[%s1117 + $0xc] sm:$0xf]
    %v1122 = vld [vmem:[%s1117 + $0x10] sm:$0xf]
    %v1123 = vld [vmem:[%s1117 + $0x14] sm:$0xf]
    %v1124 = vld [vmem:[%s1117 + $0x18] sm:$0xf]
    %v1125 = vld [vmem:[%s1117 + $0x1c] sm:$0xf]
    %v1126 = vld [vmem:[%s4 + $0x3] sm:$0x1]
    %v1127 = vlaneseq
    %v1128 = vshrl.u32 %v1127, 7
    %v1129 = vsub.s32 0, %v1128
    %v1130 = vrot.slane %v1126, %v1129
    %v1139 = vunpack.c.l.b16 %v1118
    %v1140 = vunpack.c.l.b16 %v1119
    %v1141 = vunpack.c.l.b16 %v1120
    %v1142 = vunpack.c.l.b16 %v1121
    %v1143 = vunpack.c.l.b16 %v1122
    %v1144 = vunpack.c.l.b16 %v1123
    %v1145 = vunpack.c.l.b16 %v1124
    %v1146 = vunpack.c.l.b16 %v1125
    %v1147 = vpack.c.b16 %v1140, %v1139
    %v1148 = vpack.c.b16 %v1142, %v1141
    %v1149 = vpack.c.b16 %v1144, %v1143
    %v1150 = vpack.c.b16 %v1146, %v1145
    %v1156 = vsel %vm157, %v1109, 0
    %v1159 = vsel %vm157, %v1110, 0
    %v1162 = vsel %vm157, %v1111, 0
    %v1165 = vsel %vm157, %v1112, 0
    %v1168 = vsel %vm157, %v1113, 0
    %v1171 = vsel %vm157, %v1114, 0
    %v1174 = vsel %vm157, %v1115, 0
    %v1177 = vsel %vm157, %v1116, 0
    %1179 = vmatprep.subr.bf16.mxu0 0
    %1180 = vmatpush1.bf16.msra.mxu0 %v1147
    %1181 = vmatprep.subr.bf16.mxu0 0
    %1182 = vmatpush1.bf16.msra.mxu0 %v1148
    %1183 = vmatprep.subr.bf16.mxu0 0
    %1184 = vmatpush1.bf16.msra.mxu0 %v1149
    %1185 = vmatprep.subr.bf16.mxu0 0
    %1186 = vmatpush1.bf16.msra.mxu0 %v1150
    %1187 = vmatprep.subr.bf16.mxu0 0
    %1188 = vmatpush1.bf16.msra.mxu0 0
    %1189 = vmatprep.subr.bf16.mxu0 0
    %1190 = vmatpush1.bf16.msra.mxu0 0
    %1191 = vmatprep.subr.bf16.mxu0 0
    %1192 = vmatpush1.bf16.msra.mxu0 0
    %1193 = vmatprep.subr.bf16.mxu0 0
    %1194 = vmatpush1.bf16.msra.mxu0 0
    %1195 = vmatprep.subr.bf16.mxu0 0
    %1196 = vmatpush1.bf16.msra.mxu0 0
    %1197 = vmatprep.subr.bf16.mxu0 0
    %1198 = vmatpush1.bf16.msra.mxu0 0
    %1199 = vmatprep.subr.bf16.mxu0 0
    %1200 = vmatpush1.bf16.msra.mxu0 0
    %1201 = vmatprep.subr.bf16.mxu0 0
    %1202 = vmatpush1.bf16.msra.mxu0 0
    %1203 = vmatprep.subr.bf16.mxu0 0
    %1204 = vmatpush1.bf16.msra.mxu0 0
    %1205 = vmatprep.subr.bf16.mxu0 0
    %1206 = vmatpush1.bf16.msra.mxu0 0
    %1207 = vmatprep.subr.bf16.mxu0 0
    %1208 = vmatpush1.bf16.msra.mxu0 0
    %1209 = vmatprep.subr.bf16.mxu0 0
    %1210 = vmatpush1.bf16.msra.mxu0 0
    %1211 = vmatprep.mubr.bf16.mxu0 0
    %1212 = vmatmul.mubr.bf16.gmra.mrb[0].mxu0 %v1156
    %v1213 = vpop.f32.mrb[0].mxu0
    %v1214 = vadd.f32 %v1130, %v1213
    %v1215 = vpop.f32.mrb[0].mxu0
    %v1216 = vpop.f32.mrb[0].mxu0
    %v1217 = vadd.f32 %v1130, %v1216
    %v1218 = vpop.f32.mrb[0].mxu0
    %1219 = vmatprep.mubr.bf16.mxu0 0
    %1220 = vmatmul.mubr.bf16.gmra.mrb[0].mxu0 %v1159
    %v1221 = vpop.f32.mrb[0].mxu0
    %v1222 = vadd.f32 %v1130, %v1221
    %v1223 = vpop.f32.mrb[0].mxu0
    %v1224 = vpop.f32.mrb[0].mxu0
    %v1225 = vadd.f32 %v1130, %v1224
    %v1226 = vpop.f32.mrb[0].mxu0
    %1227 = vmatprep.mubr.bf16.mxu0 0
    %1228 = vmatmul.mubr.bf16.gmra.mrb[0].mxu0 %v1162
    %v1229 = vpop.f32.mrb[0].mxu0
    %v1230 = vadd.f32 %v1130, %v1229
    %v1231 = vpop.f32.mrb[0].mxu0
    %v1232 = vpop.f32.mrb[0].mxu0
    %v1233 = vadd.f32 %v1130, %v1232
    %v1234 = vpop.f32.mrb[0].mxu0
    %1235 = vmatprep.mubr.bf16.mxu0 0
    %1236 = vmatmul.mubr.bf16.gmra.mrb[0].mxu0 %v1165
    %v1237 = vpop.f32.mrb[0].mxu0
    %v1238 = vadd.f32 %v1130, %v1237
    %v1239 = vpop.f32.mrb[0].mxu0
    %v1240 = vpop.f32.mrb[0].mxu0
    %v1241 = vadd.f32 %v1130, %v1240
    %v1242 = vpop.f32.mrb[0].mxu0
    %1243 = vmatprep.mubr.bf16.mxu0 0
    %1244 = vmatmul.mubr.bf16.gmra.mrb[0].mxu0 %v1168
    %v1245 = vpop.f32.mrb[0].mxu0
    %v1246 = vadd.f32 %v1130, %v1245
    %v1247 = vpop.f32.mrb[0].mxu0
    %v1248 = vpop.f32.mrb[0].mxu0
    %v1249 = vadd.f32 %v1130, %v1248
    %v1250 = vpop.f32.mrb[0].mxu0
    %1251 = vmatprep.mubr.bf16.mxu0 0
    %1252 = vmatmul.mubr.bf16.gmra.mrb[0].mxu0 %v1171
    %v1253 = vpop.f32.mrb[0].mxu0
    %v1254 = vadd.f32 %v1130, %v1253
    %v1255 = vpop.f32.mrb[0].mxu0
    %v1256 = vpop.f32.mrb[0].mxu0
    %v1257 = vadd.f32 %v1130, %v1256
    %v1258 = vpop.f32.mrb[0].mxu0
    %1259 = vmatprep.mubr.bf16.mxu0 0
    %1260 = vmatmul.mubr.bf16.gmra.mrb[0].mxu0 %v1174
    %v1261 = vpop.f32.mrb[0].mxu0
    %v1262 = vadd.f32 %v1130, %v1261
    %v1263 = vpop.f32.mrb[0].mxu0
    %v1264 = vpop.f32.mrb[0].mxu0
    %v1265 = vadd.f32 %v1130, %v1264
    %v1266 = vpop.f32.mrb[0].mxu0
    %1267 = vmatprep.mubr.bf16.mxu0 0
    %1268 = vmatmul.mubr.bf16.gmra.mrb[0].mxu0 %v1177
    %v1269 = vpop.f32.mrb[0].mxu0
    %v1270 = vadd.f32 %v1130, %v1269
    %v1271 = vpop.f32.mrb[0].mxu0
    %v1272 = vpop.f32.mrb[0].mxu0
    %v1273 = vadd.f32 %v1130, %v1272
    %v1274 = vpop.f32.mrb[0].mxu0
    %1275 = vdwg.mxu0
    %v1276 = vmul.f32 %v1214, %v41
    %v1277 = vmul.f32 %v1217, %v42
    %v1278 = vmul.f32 %v1222, %v43
    %v1279 = vmul.f32 %v1225, %v44
    %v1280 = vmul.f32 %v1230, %v45
    %v1281 = vmul.f32 %v1233, %v46
    %v1282 = vmul.f32 %v1238, %v47
    %v1283 = vmul.f32 %v1241, %v48
    %v1284 = vmul.f32 %v1214, %v49
    %v1285 = vmul.f32 %v1217, %v50
    %v1286 = vmul.f32 %v1222, %v51
    %v1287 = vmul.f32 %v1225, %v52
    %v1288 = vmul.f32 %v1230, %v53
    %v1289 = vmul.f32 %v1233, %v54
    %v1290 = vmul.f32 %v1238, %v55
    %v1291 = vmul.f32 %v1241, %v56
    %v1292 = vmul.f32 %v1214, %v57
    %v1293 = vmul.f32 %v1217, %v58
    %v1294 = vmul.f32 %v1222, %v59
    %v1295 = vmul.f32 %v1225, %v60
    %v1296 = vmul.f32 %v1230, %v61
    %v1297 = vmul.f32 %v1233, %v62
    %v1298 = vmul.f32 %v1238, %v63
    %v1299 = vmul.f32 %v1241, %v64
    %v1300 = vmul.f32 %v1214, %v65
    %v1301 = vmul.f32 %v1217, %v66
    %v1302 = vmul.f32 %v1222, %v67
    %v1303 = vmul.f32 %v1225, %v68
    %v1304 = vmul.f32 %v1230, %v69
    %v1305 = vmul.f32 %v1233, %v70
    %v1306 = vmul.f32 %v1238, %v71
    %v1307 = vmul.f32 %v1241, %v72
    %v1308 = vmul.f32 %v1246, %v41
    %v1309 = vmul.f32 %v1249, %v42
    %v1310 = vmul.f32 %v1254, %v43
    %v1311 = vmul.f32 %v1257, %v44
    %v1312 = vmul.f32 %v1262, %v45
    %v1313 = vmul.f32 %v1265, %v46
    %v1314 = vmul.f32 %v1270, %v47
    %v1315 = vmul.f32 %v1273, %v48
    %v1316 = vmul.f32 %v1246, %v49
    %v1317 = vmul.f32 %v1249, %v50
    %v1318 = vmul.f32 %v1254, %v51
    %v1319 = vmul.f32 %v1257, %v52
    %v1320 = vmul.f32 %v1262, %v53
    %v1321 = vmul.f32 %v1265, %v54
    %v1322 = vmul.f32 %v1270, %v55
    %v1323 = vmul.f32 %v1273, %v56
    %v1324 = vmul.f32 %v1246, %v57
    %v1325 = vmul.f32 %v1249, %v58
    %v1326 = vmul.f32 %v1254, %v59
    %v1327 = vmul.f32 %v1257, %v60
    %v1328 = vmul.f32 %v1262, %v61
    %v1329 = vmul.f32 %v1265, %v62
    %v1330 = vmul.f32 %v1270, %v63
    %v1331 = vmul.f32 %v1273, %v64
    %v1332 = vmul.f32 %v1246, %v65
    %v1333 = vmul.f32 %v1249, %v66
    %v1334 = vmul.f32 %v1254, %v67
    %v1335 = vmul.f32 %v1257, %v68
    %v1336 = vmul.f32 %v1262, %v69
    %v1337 = vmul.f32 %v1265, %v70
    %v1338 = vmul.f32 %v1270, %v71
    %v1339 = vmul.f32 %v1273, %v72
    %v1340 = vpack.c.bf16 %v1277, %v1276
    %v1341 = vpack.c.bf16 %v1279, %v1278
    %v1342 = vpack.c.bf16 %v1281, %v1280
    %v1343 = vpack.c.bf16 %v1283, %v1282
    %v1344 = vpack.c.bf16 %v1285, %v1284
    %v1345 = vpack.c.bf16 %v1287, %v1286
    %v1346 = vpack.c.bf16 %v1289, %v1288
    %v1347 = vpack.c.bf16 %v1291, %v1290
    %v1348 = vpack.c.bf16 %v1293, %v1292
    %v1349 = vpack.c.bf16 %v1295, %v1294
    %v1350 = vpack.c.bf16 %v1297, %v1296
    %v1351 = vpack.c.bf16 %v1299, %v1298
    %v1352 = vpack.c.bf16 %v1301, %v1300
    %v1353 = vpack.c.bf16 %v1303, %v1302
    %v1354 = vpack.c.bf16 %v1305, %v1304
    %v1355 = vpack.c.bf16 %v1307, %v1306
    %v1356 = vpack.c.bf16 %v1309, %v1308
    %v1357 = vpack.c.bf16 %v1311, %v1310
    %v1358 = vpack.c.bf16 %v1313, %v1312
    %v1359 = vpack.c.bf16 %v1315, %v1314
    %v1360 = vpack.c.bf16 %v1317, %v1316
    %v1361 = vpack.c.bf16 %v1319, %v1318
    %v1362 = vpack.c.bf16 %v1321, %v1320
    %v1363 = vpack.c.bf16 %v1323, %v1322
    %v1364 = vpack.c.bf16 %v1325, %v1324
    %v1365 = vpack.c.bf16 %v1327, %v1326
    %v1366 = vpack.c.bf16 %v1329, %v1328
    %v1367 = vpack.c.bf16 %v1331, %v1330
    %v1368 = vpack.c.bf16 %v1333, %v1332
    %v1369 = vpack.c.bf16 %v1335, %v1334
    %v1370 = vpack.c.bf16 %v1337, %v1336
    %v1371 = vpack.c.bf16 %v1339, %v1338
    %1404 = vrot.lane.b32.xlu0 %v41, 32
    %v1405 = vpop.permute.xlu0 %1404
    %1406 = vrot.lane.b32.xlu0 %v42, 32
    %v1407 = vpop.permute.xlu0 %1406
    %1408 = vrot.lane.b32.xlu0 %v43, 32
    %v1409 = vpop.permute.xlu0 %1408
    %1410 = vrot.lane.b32.xlu0 %v44, 32
    %v1411 = vpop.permute.xlu0 %1410
    %1412 = vrot.lane.b32.xlu0 %v45, 32
    %v1413 = vpop.permute.xlu0 %1412
    %1414 = vrot.lane.b32.xlu0 %v46, 32
    %v1415 = vpop.permute.xlu0 %1414
    %1416 = vrot.lane.b32.xlu0 %v47, 32
    %v1417 = vpop.permute.xlu0 %1416
    %1418 = vrot.lane.b32.xlu0 %v48, 32
    %v1419 = vpop.permute.xlu0 %1418
    %1420 = vrot.lane.b32.xlu0 %v49, 32
    %v1421 = vpop.permute.xlu0 %1420
    %1422 = vrot.lane.b32.xlu0 %v50, 32
    %v1423 = vpop.permute.xlu0 %1422
    %1424 = vrot.lane.b32.xlu0 %v51, 32
    %v1425 = vpop.permute.xlu0 %1424
    %1426 = vrot.lane.b32.xlu0 %v52, 32
    %v1427 = vpop.permute.xlu0 %1426
    %1428 = vrot.lane.b32.xlu0 %v53, 32
    %v1429 = vpop.permute.xlu0 %1428
    %1430 = vrot.lane.b32.xlu0 %v54, 32
    %v1431 = vpop.permute.xlu0 %1430
    %1432 = vrot.lane.b32.xlu0 %v55, 32
    %v1433 = vpop.permute.xlu0 %1432
    %1434 = vrot.lane.b32.xlu0 %v56, 32
    %v1435 = vpop.permute.xlu0 %1434
    %1436 = vrot.lane.b32.xlu0 %v57, 32
    %v1437 = vpop.permute.xlu0 %1436
    %1438 = vrot.lane.b32.xlu0 %v58, 32
    %v1439 = vpop.permute.xlu0 %1438
    %1440 = vrot.lane.b32.xlu0 %v59, 32
    %v1441 = vpop.permute.xlu0 %1440
    %1442 = vrot.lane.b32.xlu0 %v60, 32
    %v1443 = vpop.permute.xlu0 %1442
    %1444 = vrot.lane.b32.xlu0 %v61, 32
    %v1445 = vpop.permute.xlu0 %1444
    %1446 = vrot.lane.b32.xlu0 %v62, 32
    %v1447 = vpop.permute.xlu0 %1446
    %1448 = vrot.lane.b32.xlu0 %v63, 32
    %v1449 = vpop.permute.xlu0 %1448
    %1450 = vrot.lane.b32.xlu0 %v64, 32
    %v1451 = vpop.permute.xlu0 %1450
    %1452 = vrot.lane.b32.xlu0 %v65, 32
    %v1453 = vpop.permute.xlu0 %1452
    %1454 = vrot.lane.b32.xlu0 %v66, 32
    %v1455 = vpop.permute.xlu0 %1454
    %1456 = vrot.lane.b32.xlu0 %v67, 32
    %v1457 = vpop.permute.xlu0 %1456
    %1458 = vrot.lane.b32.xlu0 %v68, 32
    %v1459 = vpop.permute.xlu0 %1458
    %1460 = vrot.lane.b32.xlu0 %v69, 32
    %v1461 = vpop.permute.xlu0 %1460
    %1462 = vrot.lane.b32.xlu0 %v70, 32
    %v1463 = vpop.permute.xlu0 %1462
    %1464 = vrot.lane.b32.xlu0 %v71, 32
    %v1465 = vpop.permute.xlu0 %1464
    %1466 = vrot.lane.b32.xlu0 %v72, 32
    %v1467 = vpop.permute.xlu0 %1466
    %v1500 = vmul.f32 %v1214, %v1405
    %v1501 = vmul.f32 %v1217, %v1407
    %v1502 = vmul.f32 %v1222, %v1409
    %v1503 = vmul.f32 %v1225, %v1411
    %v1504 = vmul.f32 %v1230, %v1413
    %v1505 = vmul.f32 %v1233, %v1415
    %v1506 = vmul.f32 %v1238, %v1417
    %v1507 = vmul.f32 %v1241, %v1419
    %v1508 = vmul.f32 %v1214, %v1421
    %v1509 = vmul.f32 %v1217, %v1423
    %v1510 = vmul.f32 %v1222, %v1425
    %v1511 = vmul.f32 %v1225, %v1427
    %v1512 = vmul.f32 %v1230, %v1429
    %v1513 = vmul.f32 %v1233, %v1431
    %v1514 = vmul.f32 %v1238, %v1433
    %v1515 = vmul.f32 %v1241, %v1435
    %v1516 = vmul.f32 %v1214, %v1437
    %v1517 = vmul.f32 %v1217, %v1439
    %v1518 = vmul.f32 %v1222, %v1441
    %v1519 = vmul.f32 %v1225, %v1443
    %v1520 = vmul.f32 %v1230, %v1445
    %v1521 = vmul.f32 %v1233, %v1447
    %v1522 = vmul.f32 %v1238, %v1449
    %v1523 = vmul.f32 %v1241, %v1451
    %v1524 = vmul.f32 %v1214, %v1453
    %v1525 = vmul.f32 %v1217, %v1455
    %v1526 = vmul.f32 %v1222, %v1457
    %v1527 = vmul.f32 %v1225, %v1459
    %v1528 = vmul.f32 %v1230, %v1461
    %v1529 = vmul.f32 %v1233, %v1463
    %v1530 = vmul.f32 %v1238, %v1465
    %v1531 = vmul.f32 %v1241, %v1467
    %v1532 = vmul.f32 %v1246, %v1405
    %v1533 = vmul.f32 %v1249, %v1407
    %v1534 = vmul.f32 %v1254, %v1409
    %v1535 = vmul.f32 %v1257, %v1411
    %v1536 = vmul.f32 %v1262, %v1413
    %v1537 = vmul.f32 %v1265, %v1415
    %v1538 = vmul.f32 %v1270, %v1417
    %v1539 = vmul.f32 %v1273, %v1419
    %v1540 = vmul.f32 %v1246, %v1421
    %v1541 = vmul.f32 %v1249, %v1423
    %v1542 = vmul.f32 %v1254, %v1425
    %v1543 = vmul.f32 %v1257, %v1427
    %v1544 = vmul.f32 %v1262, %v1429
    %v1545 = vmul.f32 %v1265, %v1431
    %v1546 = vmul.f32 %v1270, %v1433
    %v1547 = vmul.f32 %v1273, %v1435
    %v1548 = vmul.f32 %v1246, %v1437
    %v1549 = vmul.f32 %v1249, %v1439
    %v1550 = vmul.f32 %v1254, %v1441
    %v1551 = vmul.f32 %v1257, %v1443
    %v1552 = vmul.f32 %v1262, %v1445
    %v1553 = vmul.f32 %v1265, %v1447
    %v1554 = vmul.f32 %v1270, %v1449
    %v1555 = vmul.f32 %v1273, %v1451
    %v1556 = vmul.f32 %v1246, %v1453
    %v1557 = vmul.f32 %v1249, %v1455
    %v1558 = vmul.f32 %v1254, %v1457
    %v1559 = vmul.f32 %v1257, %v1459
    %v1560 = vmul.f32 %v1262, %v1461
    %v1561 = vmul.f32 %v1265, %v1463
    %v1562 = vmul.f32 %v1270, %v1465
    %v1563 = vmul.f32 %v1273, %v1467
    %v1564 = vpack.c.bf16 %v1501, %v1500
    %v1565 = vpack.c.bf16 %v1503, %v1502
    %v1566 = vpack.c.bf16 %v1505, %v1504
    %v1567 = vpack.c.bf16 %v1507, %v1506
    %v1568 = vpack.c.bf16 %v1509, %v1508
    %v1569 = vpack.c.bf16 %v1511, %v1510
    %v1570 = vpack.c.bf16 %v1513, %v1512
    %v1571 = vpack.c.bf16 %v1515, %v1514
    %v1572 = vpack.c.bf16 %v1517, %v1516
    %v1573 = vpack.c.bf16 %v1519, %v1518
    %v1574 = vpack.c.bf16 %v1521, %v1520
    %v1575 = vpack.c.bf16 %v1523, %v1522
    %v1576 = vpack.c.bf16 %v1525, %v1524
    %v1577 = vpack.c.bf16 %v1527, %v1526
    %v1578 = vpack.c.bf16 %v1529, %v1528
    %v1579 = vpack.c.bf16 %v1531, %v1530
    %v1580 = vpack.c.bf16 %v1533, %v1532
    %v1581 = vpack.c.bf16 %v1535, %v1534
    %v1582 = vpack.c.bf16 %v1537, %v1536
    %v1583 = vpack.c.bf16 %v1539, %v1538
    %v1584 = vpack.c.bf16 %v1541, %v1540
    %v1585 = vpack.c.bf16 %v1543, %v1542
    %v1586 = vpack.c.bf16 %v1545, %v1544
    %v1587 = vpack.c.bf16 %v1547, %v1546
    %v1588 = vpack.c.bf16 %v1549, %v1548
    %v1589 = vpack.c.bf16 %v1551, %v1550
    %v1590 = vpack.c.bf16 %v1553, %v1552
    %v1591 = vpack.c.bf16 %v1555, %v1554
    %v1592 = vpack.c.bf16 %v1557, %v1556
    %v1593 = vpack.c.bf16 %v1559, %v1558
    %v1594 = vpack.c.bf16 %v1561, %v1560
    %v1595 = vpack.c.bf16 %v1563, %v1562
    %v1596 = vpack.c.bf16 %v1098, %v1095
    %v1597 = vpack.c.bf16 %v1106, %v1103
    %v1599 = vsel %vm113, %v1596, 0
    %v1602 = vsel %vm113, %v1340, 0
    %v1605 = vsel %vm113, %v1341, 0
    %v1608 = vsel %vm113, %v1342, 0
    %v1611 = vsel %vm113, %v1343, 0
    %v1614 = vsel %vm113, %v1344, 0
    %v1617 = vsel %vm113, %v1345, 0
    %v1620 = vsel %vm113, %v1346, 0
    %v1623 = vsel %vm113, %v1347, 0
    %v1626 = vsel %vm113, %v1348, 0
    %v1629 = vsel %vm113, %v1349, 0
    %v1632 = vsel %vm113, %v1350, 0
    %v1635 = vsel %vm113, %v1351, 0
    %v1638 = vsel %vm113, %v1352, 0
    %v1641 = vsel %vm113, %v1353, 0
    %v1644 = vsel %vm113, %v1354, 0
    %v1647 = vsel %vm113, %v1355, 0
    %1649 = vmatprep.subr.bf16.mxu0 0
    %1650 = vmatpush1.bf16.xpose.msra.mxu0 %v1602
    %1651 = vmatprep.subr.bf16.mxu0 0
    %1652 = vmatpush1.bf16.xpose.msra.mxu0 %v1605
    %1653 = vmatprep.subr.bf16.mxu0 0
    %1654 = vmatpush1.bf16.xpose.msra.mxu0 %v1608
    %1655 = vmatprep.subr.bf16.mxu0 0
    %1656 = vmatpush1.bf16.xpose.msra.mxu0 %v1611
    %1657 = vmatprep.subr.bf16.mxu0 0
    %1658 = vmatpush1.bf16.xpose.msra.mxu0 %v1614
    %1659 = vmatprep.subr.bf16.mxu0 0
    %1660 = vmatpush1.bf16.xpose.msra.mxu0 %v1617
    %1661 = vmatprep.subr.bf16.mxu0 0
    %1662 = vmatpush1.bf16.xpose.msra.mxu0 %v1620
    %1663 = vmatprep.subr.bf16.mxu0 0
    %1664 = vmatpush1.bf16.xpose.msra.mxu0 %v1623
    %1665 = vmatprep.subr.bf16.mxu0 0
    %1666 = vmatpush1.bf16.xpose.msra.mxu0 %v1626
    %1667 = vmatprep.subr.bf16.mxu0 0
    %1668 = vmatpush1.bf16.xpose.msra.mxu0 %v1629
    %1669 = vmatprep.subr.bf16.mxu0 0
    %1670 = vmatpush1.bf16.xpose.msra.mxu0 %v1632
    %1671 = vmatprep.subr.bf16.mxu0 0
    %1672 = vmatpush1.bf16.xpose.msra.mxu0 %v1635
    %1673 = vmatprep.subr.bf16.mxu0 0
    %1674 = vmatpush1.bf16.xpose.msra.mxu0 %v1638
    %1675 = vmatprep.subr.bf16.mxu0 0
    %1676 = vmatpush1.bf16.xpose.msra.mxu0 %v1641
    %1677 = vmatprep.subr.bf16.mxu0 0
    %1678 = vmatpush1.bf16.xpose.msra.mxu0 %v1644
    %1679 = vmatprep.subr.bf16.mxu0 0
    %1680 = vmatpush1.bf16.xpose.msra.mxu0 %v1647
    %1681 = vmatprep.mubr.bf16.mxu0 0
    %1682 = vmatmul.mubr.bf16.gmra.mrb[0].mxu0 %v1599
    %v1683 = vpop.f32.mrb[0].mxu0
    %v1684 = vadd.f32 0.0, %v1683
    %v1685 = vpop.f32.mrb[0].mxu0
    %v1686 = vadd.f32 0.0, %v1685
    %v1687 = vpop.f32.mrb[0].mxu0
    %v1688 = vadd.f32 0.0, %v1687
    %v1689 = vpop.f32.mrb[0].mxu0
    %v1690 = vadd.f32 0.0, %v1689
    %1691 = vdwg.mxu0
    %v1693 = vsel %vm113, %v1597, 0
    %v1696 = vsel %vm113, %v1356, 0
    %v1699 = vsel %vm113, %v1357, 0
    %v1702 = vsel %vm113, %v1358, 0
    %v1705 = vsel %vm113, %v1359, 0
    %v1708 = vsel %vm113, %v1360, 0
    %v1711 = vsel %vm113, %v1361, 0
    %v1714 = vsel %vm113, %v1362, 0
    %v1717 = vsel %vm113, %v1363, 0
    %v1720 = vsel %vm113, %v1364, 0
    %v1723 = vsel %vm113, %v1365, 0
    %v1726 = vsel %vm113, %v1366, 0
    %v1729 = vsel %vm113, %v1367, 0
    %v1732 = vsel %vm113, %v1368, 0
    %v1735 = vsel %vm113, %v1369, 0
    %v1738 = vsel %vm113, %v1370, 0
    %v1741 = vsel %vm113, %v1371, 0
    %1743 = vmatprep.subr.bf16.mxu0 0
    %1744 = vmatpush1.bf16.xpose.msra.mxu0 %v1696
    %1745 = vmatprep.subr.bf16.mxu0 0
    %1746 = vmatpush1.bf16.xpose.msra.mxu0 %v1699
    %1747 = vmatprep.subr.bf16.mxu0 0
    %1748 = vmatpush1.bf16.xpose.msra.mxu0 %v1702
    %1749 = vmatprep.subr.bf16.mxu0 0
    %1750 = vmatpush1.bf16.xpose.msra.mxu0 %v1705
    %1751 = vmatprep.subr.bf16.mxu0 0
    %1752 = vmatpush1.bf16.xpose.msra.mxu0 %v1708
    %1753 = vmatprep.subr.bf16.mxu0 0
    %1754 = vmatpush1.bf16.xpose.msra.mxu0 %v1711
    %1755 = vmatprep.subr.bf16.mxu0 0
    %1756 = vmatpush1.bf16.xpose.msra.mxu0 %v1714
    %1757 = vmatprep.subr.bf16.mxu0 0
    %1758 = vmatpush1.bf16.xpose.msra.mxu0 %v1717
    %1759 = vmatprep.subr.bf16.mxu0 0
    %1760 = vmatpush1.bf16.xpose.msra.mxu0 %v1720
    %1761 = vmatprep.subr.bf16.mxu0 0
    %1762 = vmatpush1.bf16.xpose.msra.mxu0 %v1723
    %1763 = vmatprep.subr.bf16.mxu0 0
    %1764 = vmatpush1.bf16.xpose.msra.mxu0 %v1726
    %1765 = vmatprep.subr.bf16.mxu0 0
    %1766 = vmatpush1.bf16.xpose.msra.mxu0 %v1729
    %1767 = vmatprep.subr.bf16.mxu0 0
    %1768 = vmatpush1.bf16.xpose.msra.mxu0 %v1732
    %1769 = vmatprep.subr.bf16.mxu0 0
    %1770 = vmatpush1.bf16.xpose.msra.mxu0 %v1735
    %1771 = vmatprep.subr.bf16.mxu0 0
    %1772 = vmatpush1.bf16.xpose.msra.mxu0 %v1738
    %1773 = vmatprep.subr.bf16.mxu0 0
    %1774 = vmatpush1.bf16.xpose.msra.mxu0 %v1741
    %1775 = vmatprep.mubr.bf16.mxu0 0
    %1776 = vmatmul.mubr.bf16.gmra.mrb[0].mxu0 %v1693
    %v1777 = vpop.f32.mrb[0].mxu0
    %v1778 = vadd.f32 0.0, %v1777
    %v1779 = vpop.f32.mrb[0].mxu0
    %v1780 = vadd.f32 0.0, %v1779
    %v1781 = vpop.f32.mrb[0].mxu0
    %v1782 = vadd.f32 0.0, %v1781
    %v1783 = vpop.f32.mrb[0].mxu0
    %v1784 = vadd.f32 0.0, %v1783
    %1785 = vdwg.mxu0
    %v1786 = vmax.f32 %v1684, %v1686
    %1787 = vmax.xlane.f32.xlu0 %v1786
    %v1788 = vpop.xlane.xlu0 %1787
    %v1789 = vmax.f32 %v1688, %v1690
    %1790 = vmax.xlane.f32.xlu0 %v1789
    %v1791 = vpop.xlane.xlu0 %1790
    %v1792 = vmax.f32 %v1778, %v1780
    %1793 = vmax.xlane.f32.xlu0 %v1792
    %v1794 = vpop.xlane.xlu0 %1793
    %v1795 = vmax.f32 %v1782, %v1784
    %1796 = vmax.xlane.f32.xlu0 %v1795
    %v1797 = vpop.xlane.xlu0 %1796
    %v1798 = vsub.f32 %v1684, %v1788
    %v1799 = vsub.f32 %v1686, %v1788
    %v1800 = vsub.f32 %v1688, %v1791
    %v1801 = vsub.f32 %v1690, %v1791
    %v1802 = vsub.f32 %v1778, %v1794
    %v1803 = vsub.f32 %v1780, %v1794
    %v1804 = vsub.f32 %v1782, %v1797
    %v1805 = vsub.f32 %v1784, %v1797
    %v1806 = vmul.f32 %v1798, 1.442695
    %v1807 = vpow.pop %v1806
    %v1808 = vmul.f32 %v1799, 1.442695
    %v1809 = vpow.pop %v1808
    %v1810 = vmul.f32 %v1800, 1.442695
    %v1811 = vpow.pop %v1810
    %v1812 = vmul.f32 %v1801, 1.442695
    %v1813 = vpow.pop %v1812
    %v1814 = vmul.f32 %v1802, 1.442695
    %v1815 = vpow.pop %v1814
    %v1816 = vmul.f32 %v1803, 1.442695
    %v1817 = vpow.pop %v1816
    %v1818 = vmul.f32 %v1804, 1.442695
    %v1819 = vpow.pop %v1818
    %v1820 = vmul.f32 %v1805, 1.442695
    %v1821 = vpow.pop %v1820
    %v1822 = vpack.c.bf16 %v1811, %v1807
    %v1823 = vpack.c.bf16 %v1813, %v1809
    %v1824 = vpack.c.bf16 %v1819, %v1815
    %v1825 = vpack.c.bf16 %v1821, %v1817
    %1842 = vrot.lane.b32.xlu0 %v1564, 96
    %v1843 = vpop.permute.xlu0 %1842
    %1844 = vrot.lane.b32.xlu0 %v1565, 96
    %v1845 = vpop.permute.xlu0 %1844
    %1846 = vrot.lane.b32.xlu0 %v1566, 96
    %v1847 = vpop.permute.xlu0 %1846
    %1848 = vrot.lane.b32.xlu0 %v1567, 96
    %v1849 = vpop.permute.xlu0 %1848
    %1850 = vrot.lane.b32.xlu0 %v1568, 96
    %v1851 = vpop.permute.xlu0 %1850
    %1852 = vrot.lane.b32.xlu0 %v1569, 96
    %v1853 = vpop.permute.xlu0 %1852
    %1854 = vrot.lane.b32.xlu0 %v1570, 96
    %v1855 = vpop.permute.xlu0 %1854
    %1856 = vrot.lane.b32.xlu0 %v1571, 96
    %v1857 = vpop.permute.xlu0 %1856
    %1858 = vrot.lane.b32.xlu0 %v1572, 96
    %v1859 = vpop.permute.xlu0 %1858
    %1860 = vrot.lane.b32.xlu0 %v1573, 96
    %v1861 = vpop.permute.xlu0 %1860
    %1862 = vrot.lane.b32.xlu0 %v1574, 96
    %v1863 = vpop.permute.xlu0 %1862
    %1864 = vrot.lane.b32.xlu0 %v1575, 96
    %v1865 = vpop.permute.xlu0 %1864
    %1866 = vrot.lane.b32.xlu0 %v1576, 96
    %v1867 = vpop.permute.xlu0 %1866
    %1868 = vrot.lane.b32.xlu0 %v1577, 96
    %v1869 = vpop.permute.xlu0 %1868
    %1870 = vrot.lane.b32.xlu0 %v1578, 96
    %v1871 = vpop.permute.xlu0 %1870
    %1872 = vrot.lane.b32.xlu0 %v1579, 96
    %v1873 = vpop.permute.xlu0 %1872
    %1890 = vmatprep.subr.bf16.mxu0 0
    %1891 = vmatpush1.bf16.msra.mxu0 %v1843
    %1892 = vmatprep.subr.bf16.mxu0 0
    %1893 = vmatpush1.bf16.msra.mxu0 %v1845
    %1894 = vmatprep.subr.bf16.mxu0 0
    %1895 = vmatpush1.bf16.msra.mxu0 %v1847
    %1896 = vmatprep.subr.bf16.mxu0 0
    %1897 = vmatpush1.bf16.msra.mxu0 %v1849
    %1898 = vmatprep.subr.bf16.mxu0 0
    %1899 = vmatpush1.bf16.msra.mxu0 %v1851
    %1900 = vmatprep.subr.bf16.mxu0 0
    %1901 = vmatpush1.bf16.msra.mxu0 %v1853
    %1902 = vmatprep.subr.bf16.mxu0 0
    %1903 = vmatpush1.bf16.msra.mxu0 %v1855
    %1904 = vmatprep.subr.bf16.mxu0 0
    %1905 = vmatpush1.bf16.msra.mxu0 %v1857
    %1906 = vmatprep.subr.bf16.mxu0 0
    %1907 = vmatpush1.bf16.msra.mxu0 %v1859
    %1908 = vmatprep.subr.bf16.mxu0 0
    %1909 = vmatpush1.bf16.msra.mxu0 %v1861
    %1910 = vmatprep.subr.bf16.mxu0 0
    %1911 = vmatpush1.bf16.msra.mxu0 %v1863
    %1912 = vmatprep.subr.bf16.mxu0 0
    %1913 = vmatpush1.bf16.msra.mxu0 %v1865
    %1914 = vmatprep.subr.bf16.mxu0 0
    %1915 = vmatpush1.bf16.msra.mxu0 %v1867
    %1916 = vmatprep.subr.bf16.mxu0 0
    %1917 = vmatpush1.bf16.msra.mxu0 %v1869
    %1918 = vmatprep.subr.bf16.mxu0 0
    %1919 = vmatpush1.bf16.msra.mxu0 %v1871
    %1920 = vmatprep.subr.bf16.mxu0 0
    %1921 = vmatpush1.bf16.msra.mxu0 %v1873
    %1922 = vmatprep.mubr.bf16.mxu0 %v1823
    %1923 = vmatmul.mubr.bf16.gmra.mrb[0].mxu0 %v1822
    %v1924 = vpop.f32.mrb[0].mxu0
    %v1925 = vadd.f32 0.0, %v1924
    %v1926 = vpop.f32.mrb[0].mxu0
    %v1927 = vpop.f32.mrb[0].mxu0
    %v1928 = vadd.f32 0.0, %v1927
    %v1929 = vpop.f32.mrb[0].mxu0
    %1930 = vdwg.mxu0
    %1947 = vrot.lane.b32.xlu0 %v1580, 96
    %v1948 = vpop.permute.xlu0 %1947
    %1949 = vrot.lane.b32.xlu0 %v1581, 96
    %v1950 = vpop.permute.xlu0 %1949
    %1951 = vrot.lane.b32.xlu0 %v1582, 96
    %v1952 = vpop.permute.xlu0 %1951
    %1953 = vrot.lane.b32.xlu0 %v1583, 96
    %v1954 = vpop.permute.xlu0 %1953
    %1955 = vrot.lane.b32.xlu0 %v1584, 96
    %v1956 = vpop.permute.xlu0 %1955
    %1957 = vrot.lane.b32.xlu0 %v1585, 96
    %v1958 = vpop.permute.xlu0 %1957
    %1959 = vrot.lane.b32.xlu0 %v1586, 96
    %v1960 = vpop.permute.xlu0 %1959
    %1961 = vrot.lane.b32.xlu0 %v1587, 96
    %v1962 = vpop.permute.xlu0 %1961
    %1963 = vrot.lane.b32.xlu0 %v1588, 96
    %v1964 = vpop.permute.xlu0 %1963
    %1965 = vrot.lane.b32.xlu0 %v1589, 96
    %v1966 = vpop.permute.xlu0 %1965
    %1967 = vrot.lane.b32.xlu0 %v1590, 96
    %v1968 = vpop.permute.xlu0 %1967
    %1969 = vrot.lane.b32.xlu0 %v1591, 96
    %v1970 = vpop.permute.xlu0 %1969
    %1971 = vrot.lane.b32.xlu0 %v1592, 96
    %v1972 = vpop.permute.xlu0 %1971
    %1973 = vrot.lane.b32.xlu0 %v1593, 96
    %v1974 = vpop.permute.xlu0 %1973
    %1975 = vrot.lane.b32.xlu0 %v1594, 96
    %v1976 = vpop.permute.xlu0 %1975
    %1977 = vrot.lane.b32.xlu0 %v1595, 96
    %v1978 = vpop.permute.xlu0 %1977
    %1995 = vmatprep.subr.bf16.mxu0 0
    %1996 = vmatpush1.bf16.msra.mxu0 %v1948
    %1997 = vmatprep.subr.bf16.mxu0 0
    %1998 = vmatpush1.bf16.msra.mxu0 %v1950
    %1999 = vmatprep.subr.bf16.mxu0 0
    %2000 = vmatpush1.bf16.msra.mxu0 %v1952
    %2001 = vmatprep.subr.bf16.mxu0 0
    %2002 = vmatpush1.bf16.msra.mxu0 %v1954
    %2003 = vmatprep.subr.bf16.mxu0 0
    %2004 = vmatpush1.bf16.msra.mxu0 %v1956
    %2005 = vmatprep.subr.bf16.mxu0 0
    %2006 = vmatpush1.bf16.msra.mxu0 %v1958
    %2007 = vmatprep.subr.bf16.mxu0 0
    %2008 = vmatpush1.bf16.msra.mxu0 %v1960
    %2009 = vmatprep.subr.bf16.mxu0 0
    %2010 = vmatpush1.bf16.msra.mxu0 %v1962
    %2011 = vmatprep.subr.bf16.mxu0 0
    %2012 = vmatpush1.bf16.msra.mxu0 %v1964
    %2013 = vmatprep.subr.bf16.mxu0 0
    %2014 = vmatpush1.bf16.msra.mxu0 %v1966
    %2015 = vmatprep.subr.bf16.mxu0 0
    %2016 = vmatpush1.bf16.msra.mxu0 %v1968
    %2017 = vmatprep.subr.bf16.mxu0 0
    %2018 = vmatpush1.bf16.msra.mxu0 %v1970
    %2019 = vmatprep.subr.bf16.mxu0 0
    %2020 = vmatpush1.bf16.msra.mxu0 %v1972
    %2021 = vmatprep.subr.bf16.mxu0 0
    %2022 = vmatpush1.bf16.msra.mxu0 %v1974
    %2023 = vmatprep.subr.bf16.mxu0 0
    %2024 = vmatpush1.bf16.msra.mxu0 %v1976
    %2025 = vmatprep.subr.bf16.mxu0 0
    %2026 = vmatpush1.bf16.msra.mxu0 %v1978
    %2027 = vmatprep.mubr.bf16.mxu0 %v1825
    %2028 = vmatmul.mubr.bf16.gmra.mrb[0].mxu0 %v1824
    %v2029 = vpop.f32.mrb[0].mxu0
    %v2030 = vadd.f32 0.0, %v2029
    %v2031 = vpop.f32.mrb[0].mxu0
    %v2032 = vpop.f32.mrb[0].mxu0
    %v2033 = vadd.f32 0.0, %v2032
    %v2034 = vpop.f32.mrb[0].mxu0
    %2035 = vdwg.mxu0
    %2036 = vmatprep.subr.mxu0 0.0
    %2037 = vmatpush1.msra.mxu0 %v41
    %2038 = vmatprep.subr.mxu0 0.0
    %2039 = vmatpush1.msra.mxu0 %v42
    %2040 = vmatprep.subr.mxu0 0.0
    %2041 = vmatpush1.msra.mxu0 %v43
    %2042 = vmatprep.subr.mxu0 0.0
    %2043 = vmatpush1.msra.mxu0 %v44
    %2044 = vmatprep.subr.mxu0 0.0
    %2045 = vmatpush1.msra.mxu0 %v45
    %2046 = vmatprep.subr.mxu0 0.0
    %2047 = vmatpush1.msra.mxu0 %v46
    %2048 = vmatprep.subr.mxu0 0.0
    %2049 = vmatpush1.msra.mxu0 %v47
    %2050 = vmatprep.subr.mxu0 0.0
    %2051 = vmatpush1.msra.mxu0 %v48
    %2052 = vmatprep.subr.mxu0 0.0
    %2053 = vmatpush1.msra.mxu0 %v49
    %2054 = vmatprep.subr.mxu0 0.0
    %2055 = vmatpush1.msra.mxu0 %v50
    %2056 = vmatprep.subr.mxu0 0.0
    %2057 = vmatpush1.msra.mxu0 %v51
    %2058 = vmatprep.subr.mxu0 0.0
    %2059 = vmatpush1.msra.mxu0 %v52
    %2060 = vmatprep.subr.mxu0 0.0
    %2061 = vmatpush1.msra.mxu0 %v53
    %2062 = vmatprep.subr.mxu0 0.0
    %2063 = vmatpush1.msra.mxu0 %v54
    %2064 = vmatprep.subr.mxu0 0.0
    %2065 = vmatpush1.msra.mxu0 %v55
    %2066 = vmatprep.subr.mxu0 0.0
    %2067 = vmatpush1.msra.mxu0 %v56
    %2068 = vmatprep.subr.mxu0 0.0
    %2069 = vmatpush1.msra.mxu0 %v57
    %2070 = vmatprep.subr.mxu0 0.0
    %2071 = vmatpush1.msra.mxu0 %v58
    %2072 = vmatprep.subr.mxu0 0.0
    %2073 = vmatpush1.msra.mxu0 %v59
    %2074 = vmatprep.subr.mxu0 0.0
    %2075 = vmatpush1.msra.mxu0 %v60
    %2076 = vmatprep.subr.mxu0 0.0
    %2077 = vmatpush1.msra.mxu0 %v61
    %2078 = vmatprep.subr.mxu0 0.0
    %2079 = vmatpush1.msra.mxu0 %v62
    %2080 = vmatprep.subr.mxu0 0.0
    %2081 = vmatpush1.msra.mxu0 %v63
    %2082 = vmatprep.subr.mxu0 0.0
    %2083 = vmatpush1.msra.mxu0 %v64
    %2084 = vmatprep.subr.mxu0 0.0
    %2085 = vmatpush1.msra.mxu0 %v65
    %2086 = vmatprep.subr.mxu0 0.0
    %2087 = vmatpush1.msra.mxu0 %v66
    %2088 = vmatprep.subr.mxu0 0.0
    %2089 = vmatpush1.msra.mxu0 %v67
    %2090 = vmatprep.subr.mxu0 0.0
    %2091 = vmatpush1.msra.mxu0 %v68
    %2092 = vmatprep.subr.mxu0 0.0
    %2093 = vmatpush1.msra.mxu0 %v69
    %2094 = vmatprep.subr.mxu0 0.0
    %2095 = vmatpush1.msra.mxu0 %v70
    %2096 = vmatprep.subr.mxu0 0.0
    %2097 = vmatpush1.msra.mxu0 %v71
    %2098 = vmatprep.subr.mxu0 0.0
    %2099 = vmatpush1.msra.mxu0 %v72
    %2100 = vmatprep.mubr.f32.mxu0 %v1809
    %2101 = vmatmul.mubr.f32.gmra.mrb[0].mxu0 %v1807
    %v2102 = vpop.f32.mrb[0].mxu0
    %v2103 = vadd.f32 0.0, %v2102
    %v2104 = vpop.f32.mrb[0].mxu0
    %2105 = vmatprep.mubr.f32.mxu0 %v1813
    %2106 = vmatmul.mubr.f32.gmra.mrb[0].mxu0 %v1811
    %v2107 = vpop.f32.mrb[0].mxu0
    %v2108 = vadd.f32 0.0, %v2107
    %v2109 = vpop.f32.mrb[0].mxu0
    %2110 = vmatprep.mubr.f32.mxu0 %v1817
    %2111 = vmatmul.mubr.f32.gmra.mrb[0].mxu0 %v1815
    %v2112 = vpop.f32.mrb[0].mxu0
    %v2113 = vadd.f32 0.0, %v2112
    %v2114 = vpop.f32.mrb[0].mxu0
    %2115 = vmatprep.mubr.f32.mxu0 %v1821
    %2116 = vmatmul.mubr.f32.gmra.mrb[0].mxu0 %v1819
    %v2117 = vpop.f32.mrb[0].mxu0
    %v2118 = vadd.f32 0.0, %v2117
    %v2119 = vpop.f32.mrb[0].mxu0
    %2120 = vdwg.mxu0
    %v2121 = vmax.f32 %v2103, 1e-20
    %v2122 = vmax.f32 %v2108, 1e-20
    %v2123 = vmax.f32 %v2113, 1e-20
    %v2124 = vmax.f32 %v2118, 1e-20
    %v2125 = vrcp.pop %v2121
    %v2126 = vrcp.pop %v2122
    %v2127 = vrcp.pop %v2123
    %v2128 = vrcp.pop %v2124
    %v2129 = vmul.f32 %v1925, %v2125
    %v2130 = vmul.f32 %v1928, %v2126
    %v2131 = vmul.f32 %v2030, %v2127
    %v2132 = vmul.f32 %v2033, %v2128
    %v2133 = vpack.c.bf16 %v2130, %v2129
    %v2134 = vpack.c.bf16 %v2132, %v2131
    %s2135 = scalar_lea.vmem %s3, 128
    %v2136 = vld [vmem:[%s2135] sm:$0xf]
    %v2137 = vld [vmem:[%s2135 + $0x4] sm:$0xf]
    %v2138 = vld [vmem:[%s2135 + $0x8] sm:$0xf]
    %v2139 = vld [vmem:[%s2135 + $0xc] sm:$0xf]
    %v2140 = vld [vmem:[%s4 + $0x4] sm:$0x1]
    %v2141 = vlaneseq
    %v2142 = vshrl.u32 %v2141, 7
    %v2143 = vsub.s32 0, %v2142
    %v2144 = vrot.slane %v2140, %v2143
    %v2149 = vunpack.c.l.b16 %v2136
    %v2150 = vunpack.c.l.b16 %v2137
    %v2151 = vunpack.c.l.b16 %v2138
    %v2152 = vunpack.c.l.b16 %v2139
    %v2153 = vpack.c.b16 %v2150, %v2149
    %v2154 = vpack.c.b16 %v2152, %v2151
    %v2158 = vsel %vm113, %v2133, 0
    %v2161 = vsel %vm113, %v2134, 0
    %2163 = vmatprep.subr.bf16.mxu0 0
    %2164 = vmatpush1.bf16.msra.mxu0 %v2153
    %2165 = vmatprep.subr.bf16.mxu0 0
    %2166 = vmatpush1.bf16.msra.mxu0 %v2154
    %2167 = vmatprep.subr.bf16.mxu0 0
    %2168 = vmatpush1.bf16.msra.mxu0 0
    %2169 = vmatprep.subr.bf16.mxu0 0
    %2170 = vmatpush1.bf16.msra.mxu0 0
    %2171 = vmatprep.subr.bf16.mxu0 0
    %2172 = vmatpush1.bf16.msra.mxu0 0
    %2173 = vmatprep.subr.bf16.mxu0 0
    %2174 = vmatpush1.bf16.msra.mxu0 0
    %2175 = vmatprep.subr.bf16.mxu0 0
    %2176 = vmatpush1.bf16.msra.mxu0 0
    %2177 = vmatprep.subr.bf16.mxu0 0
    %2178 = vmatpush1.bf16.msra.mxu0 0
    %2179 = vmatprep.subr.bf16.mxu0 0
    %2180 = vmatpush1.bf16.msra.mxu0 0
    %2181 = vmatprep.subr.bf16.mxu0 0
    %2182 = vmatpush1.bf16.msra.mxu0 0
    %2183 = vmatprep.subr.bf16.mxu0 0
    %2184 = vmatpush1.bf16.msra.mxu0 0
    %2185 = vmatprep.subr.bf16.mxu0 0
    %2186 = vmatpush1.bf16.msra.mxu0 0
    %2187 = vmatprep.subr.bf16.mxu0 0
    %2188 = vmatpush1.bf16.msra.mxu0 0
    %2189 = vmatprep.subr.bf16.mxu0 0
    %2190 = vmatpush1.bf16.msra.mxu0 0
    %2191 = vmatprep.subr.bf16.mxu0 0
    %2192 = vmatpush1.bf16.msra.mxu0 0
    %2193 = vmatprep.subr.bf16.mxu0 0
    %2194 = vmatpush1.bf16.msra.mxu0 0
    %2195 = vmatprep.mubr.bf16.mxu0 0
    %2196 = vmatmul.mubr.bf16.gmra.mrb[0].mxu0 %v2158
    %v2197 = vpop.f32.mrb[0].mxu0
    %v2198 = vadd.f32 %v2144, %v2197
    %v2199 = vpop.f32.mrb[0].mxu0
    %v2200 = vpop.f32.mrb[0].mxu0
    %v2201 = vadd.f32 %v2144, %v2200
    %v2202 = vpop.f32.mrb[0].mxu0
    %2203 = vmatprep.mubr.bf16.mxu0 0
    %2204 = vmatmul.mubr.bf16.gmra.mrb[0].mxu0 %v2161
    %v2205 = vpop.f32.mrb[0].mxu0
    %v2206 = vadd.f32 %v2144, %v2205
    %v2207 = vpop.f32.mrb[0].mxu0
    %v2208 = vpop.f32.mrb[0].mxu0
    %v2209 = vadd.f32 %v2144, %v2208
    %v2210 = vpop.f32.mrb[0].mxu0
    %2211 = vdwg.mxu0
    %v2212 = vadd.f32 %v1022, %v2198
    %v2213 = vadd.f32 %v1023, %v2201
    %v2214 = vadd.f32 %v1024, %v2206
    %v2215 = vadd.f32 %v1025, %v2209
    %v2216 = vld [vmem:[%s4 + $0x9] sm:$0x1]
    %v2217 = vld [vmem:[%s4 + $0xa] sm:$0x1]
    %v2218 = vsel %vm113, %v2212, 0.0
    %2219 = vadd.xlane.f32.xlu0 %v2218
    %v2220 = vpop.xlane.xlu0 %2219
    %v2221 = vsel %vm113, %v2213, 0.0
    %2222 = vadd.xlane.f32.xlu0 %v2221
    %v2223 = vpop.xlane.xlu0 %2222
    %v2224 = vsel %vm113, %v2214, 0.0
    %2225 = vadd.xlane.f32.xlu0 %v2224
    %v2226 = vpop.xlane.xlu0 %2225
    %v2227 = vsel %vm113, %v2215, 0.0
    %2228 = vadd.xlane.f32.xlu0 %v2227
    %v2229 = vpop.xlane.xlu0 %2228
    %v2230 = vmul.f32 %v2220, %v969
    %v2231 = vmul.f32 %v2223, %v969
    %v2232 = vmul.f32 %v2226, %v969
    %v2233 = vmul.f32 %v2229, %v969
    %v2234 = vsub.f32 %v2212, %v2230
    %v2235 = vsub.f32 %v2213, %v2231
    %v2236 = vsub.f32 %v2214, %v2232
    %v2237 = vsub.f32 %v2215, %v2233
    %v2238 = vmul.f32 %v2234, %v2234
    %v2239 = vmul.f32 %v2235, %v2235
    %v2240 = vmul.f32 %v2236, %v2236
    %v2241 = vmul.f32 %v2237, %v2237
    %v2242 = vsel %vm113, %v2238, 0.0
    %2243 = vadd.xlane.f32.xlu0 %v2242
    %v2244 = vpop.xlane.xlu0 %2243
    %v2245 = vsel %vm113, %v2239, 0.0
    %2246 = vadd.xlane.f32.xlu0 %v2245
    %v2247 = vpop.xlane.xlu0 %2246
    %v2248 = vsel %vm113, %v2240, 0.0
    %2249 = vadd.xlane.f32.xlu0 %v2248
    %v2250 = vpop.xlane.xlu0 %2249
    %v2251 = vsel %vm113, %v2241, 0.0
    %2252 = vadd.xlane.f32.xlu0 %v2251
    %v2253 = vpop.xlane.xlu0 %2252
    %v2254 = vmul.f32 %v2244, %v969
    %v2255 = vmul.f32 %v2247, %v969
    %v2256 = vmul.f32 %v2250, %v969
    %v2257 = vmul.f32 %v2253, %v969
    %v2258 = vadd.f32 %v2254, 1e-05
    %v2259 = vadd.f32 %v2255, 1e-05
    %v2260 = vadd.f32 %v2256, 1e-05
    %v2261 = vadd.f32 %v2257, 1e-05
    %v2262 = vrsqrt.pop %v2258
    %v2263 = vrsqrt.pop %v2259
    %v2264 = vrsqrt.pop %v2260
    %v2265 = vrsqrt.pop %v2261
    %v2266 = vmul.f32 %v2234, %v2262
    %v2267 = vmul.f32 %v2235, %v2263
    %v2268 = vmul.f32 %v2236, %v2264
    %v2269 = vmul.f32 %v2237, %v2265
    %v2270 = vlaneseq
    %v2271 = vshrl.u32 %v2270, 7
    %v2272 = vsub.s32 0, %v2271
    %v2273 = vrot.slane %v2216, %v2272
    %v2274 = vmul.f32 %v2266, %v2273
    %v2275 = vmul.f32 %v2267, %v2273
    %v2276 = vmul.f32 %v2268, %v2273
    %v2277 = vmul.f32 %v2269, %v2273
    %v2278 = vlaneseq
    %v2279 = vshrl.u32 %v2278, 7
    %v2280 = vsub.s32 0, %v2279
    %v2281 = vrot.slane %v2217, %v2280
    %v2282 = vadd.f32 %v2274, %v2281
    %v2283 = vadd.f32 %v2275, %v2281
    %v2284 = vadd.f32 %v2276, %v2281
    %v2285 = vadd.f32 %v2277, %v2281
    %v2286 = vpack.c.bf16 %v2283, %v2282
    %v2287 = vpack.c.bf16 %v2285, %v2284
    %s2288 = scalar_lea.vmem %s3, 160
    %v2289 = vld [vmem:[%s2288] sm:$0xf]
    %v2290 = vld [vmem:[%s2288 + $0x4] sm:$0xf]
    %v2291 = vld [vmem:[%s2288 + $0x8] sm:$0xf]
    %v2292 = vld [vmem:[%s2288 + $0xc] sm:$0xf]
    %v2293 = vld [vmem:[%s4 + $0x5] sm:$0x1]
    %v2294 = vlaneseq
    %v2295 = vshrl.u32 %v2294, 7
    %v2296 = vsub.s32 0, %v2295
    %v2297 = vrot.slane %v2293, %v2296
    %v2302 = vunpack.c.l.b16 %v2289
    %v2303 = vunpack.c.l.b16 %v2290
    %v2304 = vunpack.c.l.b16 %v2291
    %v2305 = vunpack.c.l.b16 %v2292
    %v2306 = vpack.c.b16 %v2303, %v2302
    %v2307 = vpack.c.b16 %v2305, %v2304
    %v2311 = vsel %vm113, %v2286, 0
    %v2314 = vsel %vm113, %v2287, 0
    %2316 = vmatprep.subr.bf16.mxu0 0
    %2317 = vmatpush1.bf16.msra.mxu0 %v2306
    %2318 = vmatprep.subr.bf16.mxu0 0
    %2319 = vmatpush1.bf16.msra.mxu0 %v2307
    %2320 = vmatprep.subr.bf16.mxu0 0
    %2321 = vmatpush1.bf16.msra.mxu0 0
    %2322 = vmatprep.subr.bf16.mxu0 0
    %2323 = vmatpush1.bf16.msra.mxu0 0
    %2324 = vmatprep.subr.bf16.mxu0 0
    %2325 = vmatpush1.bf16.msra.mxu0 0
    %2326 = vmatprep.subr.bf16.mxu0 0
    %2327 = vmatpush1.bf16.msra.mxu0 0
    %2328 = vmatprep.subr.bf16.mxu0 0
    %2329 = vmatpush1.bf16.msra.mxu0 0
    %2330 = vmatprep.subr.bf16.mxu0 0
    %2331 = vmatpush1.bf16.msra.mxu0 0
    %2332 = vmatprep.subr.bf16.mxu0 0
    %2333 = vmatpush1.bf16.msra.mxu0 0
    %2334 = vmatprep.subr.bf16.mxu0 0
    %2335 = vmatpush1.bf16.msra.mxu0 0
    %2336 = vmatprep.subr.bf16.mxu0 0
    %2337 = vmatpush1.bf16.msra.mxu0 0
    %2338 = vmatprep.subr.bf16.mxu0 0
    %2339 = vmatpush1.bf16.msra.mxu0 0
    %2340 = vmatprep.subr.bf16.mxu0 0
    %2341 = vmatpush1.bf16.msra.mxu0 0
    %2342 = vmatprep.subr.bf16.mxu0 0
    %2343 = vmatpush1.bf16.msra.mxu0 0
    %2344 = vmatprep.subr.bf16.mxu0 0
    %2345 = vmatpush1.bf16.msra.mxu0 0
    %2346 = vmatprep.subr.bf16.mxu0 0
    %2347 = vmatpush1.bf16.msra.mxu0 0
    %2348 = vmatprep.mubr.bf16.mxu0 0
    %2349 = vmatmul.mubr.bf16.gmra.mrb[0].mxu0 %v2311
    %v2350 = vpop.f32.mrb[0].mxu0
    %v2351 = vadd.f32 %v2297, %v2350
    %v2352 = vpop.f32.mrb[0].mxu0
    %v2353 = vpop.f32.mrb[0].mxu0
    %v2354 = vadd.f32 %v2297, %v2353
    %v2355 = vpop.f32.mrb[0].mxu0
    %2356 = vmatprep.mubr.bf16.mxu0 0
    %2357 = vmatmul.mubr.bf16.gmra.mrb[0].mxu0 %v2314
    %v2358 = vpop.f32.mrb[0].mxu0
    %v2359 = vadd.f32 %v2297, %v2358
    %v2360 = vpop.f32.mrb[0].mxu0
    %v2361 = vpop.f32.mrb[0].mxu0
    %v2362 = vadd.f32 %v2297, %v2361
    %v2363 = vpop.f32.mrb[0].mxu0
    %2364 = vdwg.mxu0
    %v2365 = vmax.f32 %v2351, 0.0
    %v2366 = vmax.f32 %v2354, 0.0
    %v2367 = vmax.f32 %v2359, 0.0
    %v2368 = vmax.f32 %v2362, 0.0
    %v2369 = vpack.c.bf16 %v2366, %v2365
    %v2370 = vpack.c.bf16 %v2368, %v2367
    %s2371 = scalar_lea.vmem %s3, 192
    %v2372 = vld [vmem:[%s2371] sm:$0xf]
    %v2373 = vld [vmem:[%s2371 + $0x4] sm:$0xf]
    %v2374 = vld [vmem:[%s2371 + $0x8] sm:$0xf]
    %v2375 = vld [vmem:[%s2371 + $0xc] sm:$0xf]
    %v2376 = vld [vmem:[%s2371 + $0x10] sm:$0xf]
    %v2377 = vld [vmem:[%s2371 + $0x14] sm:$0xf]
    %v2378 = vld [vmem:[%s2371 + $0x18] sm:$0xf]
    %v2379 = vld [vmem:[%s2371 + $0x1c] sm:$0xf]
    %v2380 = vld [vmem:[%s4 + $0x6] sm:$0x1]
    %v2381 = vlaneseq
    %v2382 = vshrl.u32 %v2381, 7
    %v2383 = vsub.s32 0, %v2382
    %v2384 = vrot.slane %v2380, %v2383
    %v2393 = vunpack.c.l.b16 %v2372
    %v2394 = vunpack.c.l.b16 %v2373
    %v2395 = vunpack.c.l.b16 %v2374
    %v2396 = vunpack.c.l.b16 %v2375
    %v2397 = vunpack.c.l.b16 %v2376
    %v2398 = vunpack.c.l.b16 %v2377
    %v2399 = vunpack.c.l.b16 %v2378
    %v2400 = vunpack.c.l.b16 %v2379
    %v2401 = vpack.c.b16 %v2394, %v2393
    %v2402 = vpack.c.b16 %v2396, %v2395
    %v2403 = vpack.c.b16 %v2398, %v2397
    %v2404 = vpack.c.b16 %v2400, %v2399
    %v2410 = vsel %vm157, %v2369, 0
    %v2413 = vsel %vm157, %v2370, 0
    %2415 = vmatprep.subr.bf16.mxu0 0
    %2416 = vmatpush1.bf16.msra.mxu0 %v2401
    %2417 = vmatprep.subr.bf16.mxu0 0
    %2418 = vmatpush1.bf16.msra.mxu0 %v2402
    %2419 = vmatprep.subr.bf16.mxu0 0
    %2420 = vmatpush1.bf16.msra.mxu0 %v2403
    %2421 = vmatprep.subr.bf16.mxu0 0
    %2422 = vmatpush1.bf16.msra.mxu0 %v2404
    %2423 = vmatprep.subr.bf16.mxu0 0
    %2424 = vmatpush1.bf16.msra.mxu0 0
    %2425 = vmatprep.subr.bf16.mxu0 0
    %2426 = vmatpush1.bf16.msra.mxu0 0
    %2427 = vmatprep.subr.bf16.mxu0 0
    %2428 = vmatpush1.bf16.msra.mxu0 0
    %2429 = vmatprep.subr.bf16.mxu0 0
    %2430 = vmatpush1.bf16.msra.mxu0 0
    %2431 = vmatprep.subr.bf16.mxu0 0
    %2432 = vmatpush1.bf16.msra.mxu0 0
    %2433 = vmatprep.subr.bf16.mxu0 0
    %2434 = vmatpush1.bf16.msra.mxu0 0
    %2435 = vmatprep.subr.bf16.mxu0 0
    %2436 = vmatpush1.bf16.msra.mxu0 0
    %2437 = vmatprep.subr.bf16.mxu0 0
    %2438 = vmatpush1.bf16.msra.mxu0 0
    %2439 = vmatprep.subr.bf16.mxu0 0
    %2440 = vmatpush1.bf16.msra.mxu0 0
    %2441 = vmatprep.subr.bf16.mxu0 0
    %2442 = vmatpush1.bf16.msra.mxu0 0
    %2443 = vmatprep.subr.bf16.mxu0 0
    %2444 = vmatpush1.bf16.msra.mxu0 0
    %2445 = vmatprep.subr.bf16.mxu0 0
    %2446 = vmatpush1.bf16.msra.mxu0 0
    %2447 = vmatprep.mubr.bf16.mxu0 0
    %2448 = vmatmul.mubr.bf16.gmra.mrb[0].mxu0 %v2410
    %v2449 = vpop.f32.mrb[0].mxu0
    %v2450 = vadd.f32 %v2384, %v2449
    %v2451 = vpop.f32.mrb[0].mxu0
    %v2452 = vpop.f32.mrb[0].mxu0
    %v2453 = vadd.f32 %v2384, %v2452
    %v2454 = vpop.f32.mrb[0].mxu0
    %2455 = vmatprep.mubr.bf16.mxu0 0
    %2456 = vmatmul.mubr.bf16.gmra.mrb[0].mxu0 %v2413
    %v2457 = vpop.f32.mrb[0].mxu0
    %v2458 = vadd.f32 %v2384, %v2457
    %v2459 = vpop.f32.mrb[0].mxu0
    %v2460 = vpop.f32.mrb[0].mxu0
    %v2461 = vadd.f32 %v2384, %v2460
    %v2462 = vpop.f32.mrb[0].mxu0
    %2463 = vdwg.mxu0
    %v2464 = vadd.f32 %v2282, %v2450
    %v2465 = vadd.f32 %v2283, %v2453
    %v2466 = vadd.f32 %v2284, %v2458
    %v2467 = vadd.f32 %v2285, %v2461
    %v2468 = vld [vmem:[%s4 + $0xb] sm:$0x1]
    %v2469 = vld [vmem:[%s4 + $0xc] sm:$0x1]
    %v2470 = vsel %vm113, %v2464, 0.0
    %2471 = vadd.xlane.f32.xlu0 %v2470
    %v2472 = vpop.xlane.xlu0 %2471
    %v2473 = vsel %vm113, %v2465, 0.0
    %2474 = vadd.xlane.f32.xlu0 %v2473
    %v2475 = vpop.xlane.xlu0 %2474
    %v2476 = vsel %vm113, %v2466, 0.0
    %2477 = vadd.xlane.f32.xlu0 %v2476
    %v2478 = vpop.xlane.xlu0 %2477
    %v2479 = vsel %vm113, %v2467, 0.0
    %2480 = vadd.xlane.f32.xlu0 %v2479
    %v2481 = vpop.xlane.xlu0 %2480
    %v2482 = vmul.f32 %v2472, %v969
    %v2483 = vmul.f32 %v2475, %v969
    %v2484 = vmul.f32 %v2478, %v969
    %v2485 = vmul.f32 %v2481, %v969
    %v2486 = vsub.f32 %v2464, %v2482
    %v2487 = vsub.f32 %v2465, %v2483
    %v2488 = vsub.f32 %v2466, %v2484
    %v2489 = vsub.f32 %v2467, %v2485
    %v2490 = vmul.f32 %v2486, %v2486
    %v2491 = vmul.f32 %v2487, %v2487
    %v2492 = vmul.f32 %v2488, %v2488
    %v2493 = vmul.f32 %v2489, %v2489
    %v2494 = vsel %vm113, %v2490, 0.0
    %2495 = vadd.xlane.f32.xlu0 %v2494
    %v2496 = vpop.xlane.xlu0 %2495
    %v2497 = vsel %vm113, %v2491, 0.0
    %2498 = vadd.xlane.f32.xlu0 %v2497
    %v2499 = vpop.xlane.xlu0 %2498
    %v2500 = vsel %vm113, %v2492, 0.0
    %2501 = vadd.xlane.f32.xlu0 %v2500
    %v2502 = vpop.xlane.xlu0 %2501
    %v2503 = vsel %vm113, %v2493, 0.0
    %2504 = vadd.xlane.f32.xlu0 %v2503
    %v2505 = vpop.xlane.xlu0 %2504
    %v2506 = vmul.f32 %v2496, %v969
    %v2507 = vmul.f32 %v2499, %v969
    %v2508 = vmul.f32 %v2502, %v969
    %v2509 = vmul.f32 %v2505, %v969
    %v2510 = vadd.f32 %v2506, 1e-05
    %v2511 = vadd.f32 %v2507, 1e-05
    %v2512 = vadd.f32 %v2508, 1e-05
    %v2513 = vadd.f32 %v2509, 1e-05
    %v2514 = vrsqrt.pop %v2510
    %v2515 = vrsqrt.pop %v2511
    %v2516 = vrsqrt.pop %v2512
    %v2517 = vrsqrt.pop %v2513
    %v2518 = vmul.f32 %v2486, %v2514
    %v2519 = vmul.f32 %v2487, %v2515
    %v2520 = vmul.f32 %v2488, %v2516
    %v2521 = vmul.f32 %v2489, %v2517
    %v2522 = vlaneseq
    %v2523 = vshrl.u32 %v2522, 7
    %v2524 = vsub.s32 0, %v2523
    %v2525 = vrot.slane %v2468, %v2524
    %v2526 = vmul.f32 %v2518, %v2525
    %v2527 = vmul.f32 %v2519, %v2525
    %v2528 = vmul.f32 %v2520, %v2525
    %v2529 = vmul.f32 %v2521, %v2525
    %v2530 = vlaneseq
    %v2531 = vshrl.u32 %v2530, 7
    %v2532 = vsub.s32 0, %v2531
    %v2533 = vrot.slane %v2469, %v2532
    %v2534 = vadd.f32 %v2526, %v2533
    %v2535 = vadd.f32 %v2527, %v2533
    %v2536 = vadd.f32 %v2528, %v2533
    %v2537 = vadd.f32 %v2529, %v2533
    %2538 = vst.msk [vmem:[#allocation2] sm:$0xff] %vm113, %v2534
    %2539 = vst.msk [vmem:[#allocation2 + $0x8] sm:$0xff] %vm113, %v2535
    %2540 = vst.msk [vmem:[#allocation2 + $0x10] sm:$0xff] %vm113, %v2536
    %2541 = vst.msk [vmem:[#allocation2 + $0x18] sm:$0xff] %vm113, %v2537
    // Predicated region
    $region26: #{tpu_custom_call.1} parent=1 // pred_check
      _
    $region27: #{tpu_custom_call.1} parent=1 // pred_check_branch
      %2543 = sbr.rel (0) target = $region29
    $region28: #{tpu_custom_call.1} parent=1 // pred_region
      %s2545 = ssub.s32 512, 512
      %2546 = vsyncadd [#allocation3], %s2545
      %s2547 = sshll.u32 [#allocation2], 4
      %s2548 = int_to_ptr.vmem [resolvable:$true] %s2547
      %2553 = dma.vmem_to_hbm [thread:$0]  %s2548, 512, %s6, [#allocation3], 128, 128, 8
    $region29: #{tpu_custom_call.1} parent=1 // pred_fallthru
      _
    // Predicated region
    $region30: #{tpu_custom_call.1} parent=1 // pred_check
      _
    $region31: #{tpu_custom_call.1} parent=1 // pred_check_branch
      %2555 = sbr.rel (0) target = $region33
    $region32: #{tpu_custom_call.1} parent=1 // pred_region
      %2556 = dma.done [#allocation3], 512
    $region33: #{tpu_custom_call.1} parent=1 // pred_fallthru
      _
    %2557 = vsyncpa [#allocation3], 1

</llo_original>
